<compile_context>
chip_gen: v7x
topology: tpu7x:2x2x1
jax: 0.10.0
libtpu: 0.0.40
codegen_flags: <defaults>
</compile_context>

<pallas_src>
import math
from functools import partial

import jax
import jax.numpy as jnp
from jax.experimental import pallas as pl
from jax.experimental.pallas import tpu as pltpu


# ----------------------------- kernel helpers -----------------------------

def _layernorm(x, w, b, eps=1e-5):
    mu = jnp.mean(x, axis=-1, keepdims=True)
    xc = x - mu
    var = jnp.mean(xc * xc, axis=-1, keepdims=True)
    return xc * jax.lax.rsqrt(var + eps) * w + b


def _gelu_exact(x):
    # PyTorch nn.GELU() default: 0.5 * x * (1 + erf(x / sqrt(2)))
    return 0.5 * x * (1.0 + jax.lax.erf(x * (1.0 / math.sqrt(2.0))))


# --------------------------------- kernel ---------------------------------

def ggt_kernel(x_ref, g_ref,
               wqkv_ref, bqkv_ref, wo_ref, bo_ref,
               wga_ref, wgb_ref, bg_ref,
               ln1w_ref, ln1b_ref, ln2w_ref, ln2b_ref,
               w1_ref, b1_ref, w2_ref, b2_ref,
               out_ref, *, n_heads):
    x = x_ref[...]                       # (bb, S, D) in compute dtype (f32 or bf16)
    g = g_ref[...]                       # (bb, S, S)
    bb, S, D = x.shape
    H = n_heads
    hd = D // H
    cd = x.dtype                         # MXU input dtype

    xf = x.reshape(bb * S, D)

    # --- fused QKV projection: ONE (bb*S, D) @ (D, 3D) MXU pass (Q scale pre-folded) ---
    qkv = jnp.dot(xf, wqkv_ref[...], preferred_element_type=jnp.float32) + bqkv_ref[0]
    qkv = qkv.reshape(bb, S, 3 * D)
    q = qkv[:, :, 0 * D:1 * D].astype(cd)
    k = qkv[:, :, 1 * D:2 * D].astype(cd)
    v = qkv[:, :, 2 * D:3 * D].astype(cd)

    # --- per-head attention: only score / PV contractions are head-local by definition.
    #     Batched over bb via single-batch-dim einsums; static unroll over the small,
    #     fixed head count (instruction growth bounded by H, not by batch).
    head_outs = []
    for h in range(H):
        qh = q[:, :, h * hd:(h + 1) * hd]
        kh = k[:, :, h * hd:(h + 1) * hd]
        vh = v[:, :, h * hd:(h + 1) * hd]
        s = jnp.einsum('bqe,bke->bqk', qh, kh,
                       preferred_element_type=jnp.float32)          # (bb, S, S)
        m = jnp.max(s, axis=-1, keepdims=True)
        e = jnp.exp(s - m)
        p = e / jnp.sum(e, axis=-1, keepdims=True)                   # exact softmax, f32
        head_outs.append(jnp.einsum('bqk,bke->bqe', p.astype(cd), vh,
                                    preferred_element_type=jnp.float32))
    o = jnp.concatenate(head_outs, axis=-1)          # (bb, S, D): lane concat == head concat

    # --- output projection folded into ONE full-D matmul against Wo^T ---
    attn = (jnp.dot(o.reshape(bb * S, D).astype(cd), wo_ref[...],
                    preferred_element_type=jnp.float32) + bo_ref[0])  # (bb*S, D)

    # --- graph aggregation: bmm(graph, x), batched over bb ---
    gagg = jnp.einsum('bij,bjd->bid', g, x,
                      preferred_element_type=jnp.float32).reshape(bb * S, D)

    # --- graph gate: sigmoid(Linear(concat([attn, gagg], -1))) without the concat ---
    gate = jax.nn.sigmoid(
        jnp.dot(attn.astype(cd), wga_ref[...], preferred_element_type=jnp.float32)
        + jnp.dot(gagg.astype(cd), wgb_ref[...], preferred_element_type=jnp.float32)
        + bg_ref[0])
    mixed = gate * attn + (1.0 - gate) * gagg

    # --- residual + LayerNorm 1 (f32) ---
    x1 = _layernorm(xf.astype(jnp.float32) + mixed, ln1w_ref[0], ln1b_ref[0])

    # --- FFN: Linear(D,4D) -> exact GELU -> Linear(4D,D); dropouts are eval no-ops ---
    h1 = _gelu_exact(jnp.dot(x1.astype(cd), w1_ref[...],
                             preferred_element_type=jnp.float32) + b1_ref[0])
    ffn = jnp.dot(h1.astype(cd), w2_ref[...],
                  preferred_element_type=jnp.float32) + b2_ref[0]

    # --- residual + LayerNorm 2 ---
    y = _layernorm(x1 + ffn, ln2w_ref[0], ln2b_ref[0])
    out_ref[...] = y.reshape(bb, S, D).astype(out_ref.dtype)


# --------------------------- host-side weight prep --------------------------
# Call ONCE at parameter-load time; keeps all transposes / splits / scale folding
# out of the per-call path so nothing but the custom call runs per forward.

def prepare_params(params, n_heads, compute_dtype=jnp.float32):
    (wqkv, bqkv, wo, bo, wg, bg, ln1w, ln1b, ln2w, ln2b, w1, b1, w2, b2) = params
    D = wo.shape[0]
    hd = D // n_heads
    scale = 1.0 / math.sqrt(hd)

    # fused QKV weight (D, 3D); attention scale folded into the Q columns + Q bias
    col_scale = jnp.concatenate([jnp.full((D,), scale, jnp.float32),
                                 jnp.ones((2 * D,), jnp.float32)])
    wqkv_f = (wqkv.T * col_scale[None, :]).astype(compute_dtype)   # (D, 3D)
    bqkv_f = (bqkv * col_scale[None, :]).astype(jnp.float32)       # (1, 3D)

    wot = wo.T.astype(compute_dtype)          # (D, D)   full output projection
    wga = wg[:, :D].T.astype(compute_dtype)   # (D, D)   gate half acting on attn
    wgb = wg[:, D:].T.astype(compute_dtype)   # (D, D)   gate half acting on graph_agg
    w1t = w1.T.astype(compute_dtype)          # (D, 4D)
    w2t = w2.T.astype(compute_dtype)          # (4D, D)

    f32 = lambda a: a.astype(jnp.float32)     # biases / LN params stay f32
    return (wqkv_f, bqkv_f, wot, f32(bo), wga, wgb, f32(bg),
            f32(ln1w), f32(ln1b), f32(ln2w), f32(ln2b),
            w1t, f32(b1), w2t, f32(b2))


# -------------------------------- wrapper ---------------------------------

def _full_spec(a):
    nd = a.ndim
    return pl.BlockSpec(a.shape, lambda i, _nd=nd: (0,) * _nd)


def graph_guided_transformer_layer(x, graph, prepped_params, n_heads,
                                   batch_block=None,
                                   vmem_budget_bytes=48 * 1024 * 1024):
    B, S, D = x.shape
    cd = prepped_params[0].dtype                       # compute dtype from prepped weights
    act_itemsize = jnp.dtype(cd).itemsize
    weight_bytes = sum(int(w.size) * jnp.dtype(w.dtype).itemsize for w in prepped_params)

    # per-step VMEM working set: double-buffered x / graph / out blocks + resident
    # weights + f32 intermediates (qkv, h1, per-head scores, gate, ...)
    def step_bytes(bb_):
        x_b = bb_ * S * D * act_itemsize
        g_b = bb_ * S * S * act_itemsize
        o_b = bb_ * S * D * 4                          # output written in f32
        inter = bb_ * S * (10 * D + 2 * S) * 4
        return 2 * (x_b + g_b + o_b) + weight_bytes + inter

    if batch_block is None:
        divisors = [d for d in range(1, B + 1) if B % d == 0]
        fitting = [d for d in divisors if step_bytes(d) <= vmem_budget_bytes] or [1]
        bb = max(fitting)
        # keep >= 2 grid steps when possible: overlaps DMA with compute and lets the
        # parallel batch axis shard across TensorCores on multi-core chips (v7x).
        if B >= 2 and bb == B and len(fitting) > 1:
            bb = max(d for d in fitting if d < B)
    else:
        bb = batch_block
    assert B % bb == 0, "batch_block must divide batch size"

    x_c = x.astype(cd)
    g_c = graph.astype(cd)

    in_specs = [
        pl.BlockSpec((bb, S, D), lambda i: (i, 0, 0)),   # x
        pl.BlockSpec((bb, S, S), lambda i: (i, 0, 0)),   # graph
    ] + [_full_spec(w) for w in prepped_params]
    out_specs = pl.BlockSpec((bb, S, D), lambda i: (i, 0, 0))

    vmem_limit = int(min(64 * 2 ** 20, max(16 * 2 ** 20, 2 * step_bytes(bb))))

    # advisory cost estimate so XLA schedules surrounding ops sensibly
    matmul_flops = 2 * B * S * D * (14 * D) + 6 * B * S * S * D
    transcendentals = B * S * (n_heads * S + D + 4 * D + 2)
    bytes_accessed = (int(x_c.size) + int(g_c.size)) * act_itemsize \
        + B * S * D * 4 + weight_bytes

    return pl.pallas_call(
        partial(ggt_kernel, n_heads=n_heads),
        out_shape=jax.ShapeDtypeStruct((B, S, D), jnp.float32),
        grid_spec=pltpu.PrefetchScalarGridSpec(
            num_scalar_prefetch=0,
            grid=(B // bb,),
            in_specs=in_specs,
            out_specs=out_specs,
        ),
        compiler_params=pltpu.CompilerParams(
            dimension_semantics=("parallel",),
            vmem_limit_bytes=vmem_limit,
        ),
        cost_estimate=pl.CostEstimate(
            flops=int(matmul_flops),
            transcendentals=int(transcendentals),
            bytes_accessed=int(bytes_accessed),
        ),
    )(x_c, g_c, *prepped_params)


# --------------------------- pure-JAX reference ----------------------------

def reference_forward(x, graph, params, n_heads):
    (wqkv, bqkv, wo, bo, wg, bg, ln1w, ln1b, ln2w, ln2b, w1, b1, w2, b2) = params
    B, S, D = x.shape
    hd = D // n_heads

    def ln(v, w, b, eps=1e-5):
        mu = jnp.mean(v, -1, keepdims=True)
        var = jnp.mean((v - mu) ** 2, -1, keepdims=True)
        return (v - mu) / jnp.sqrt(var + eps) * w + b

    qkv = jnp.einsum('bsd,ed->bse', x, wqkv) + bqkv[0]
    q, k, v = qkv[..., :D], qkv[..., D:2 * D], qkv[..., 2 * D:]
    qh = q.reshape(B, S, n_heads, hd).transpose(0, 2, 1, 3) / math.sqrt(hd)
    kh = k.reshape(B, S, n_heads, hd).transpose(0, 2, 1, 3)
    vh = v.reshape(B, S, n_heads, hd).transpose(0, 2, 1, 3)
    p = jax.nn.softmax(jnp.einsum('bhqd,bhkd->bhqk', qh, kh), axis=-1)
    o = jnp.einsum('bhqk,bhkd->bhqd', p, vh).transpose(0, 2, 1, 3).reshape(B, S, D)
    attn = jnp.einsum('bsd,ed->bse', o, wo) + bo[0]
    gagg = jnp.einsum('bij,bjd->bid', graph, x)
    gate = jax.nn.sigmoid(
        jnp.einsum('bse,de->bsd', jnp.concatenate([attn, gagg], -1), wg) + bg[0])
    mixed = gate * attn + (1 - gate) * gagg
    x1 = ln(x + mixed, ln1w[0], ln1b[0])
    h1 = jax.nn.gelu(jnp.einsum('bsd,ed->bse', x1, w1) + b1[0], approximate=False)
    ffn = jnp.einsum('bse,de->bsd', h1, w2) + b2[0]
    return ln(x1 + ffn, ln2w[0], ln2b[0])


# ---------------------------------- main -----------------------------------

if __name__ == "__main__":
    B, S, D, H = 2, 8, 32, 4   # batch, input_dim (tokens), d_model, n_heads

    key = jax.random.PRNGKey(0)
    ks = jax.random.split(key, 12)

    def w(k, shape, scale=0.05):
        return (scale * jax.random.normal(k, shape)).astype(jnp.float32)

    # biases / LN params kept 2D (1, N) for TPU-friendly layout
    params = (
        w(ks[0], (3 * D, D)),            # in_proj_weight
        w(ks[1], (1, 3 * D)),            # in_proj_bias
        w(ks[2], (D, D)),                # out_proj.weight
        w(ks[3], (1, D)),                # out_proj.bias
        w(ks[4], (D, 2 * D)),            # graph_gate Linear weight
        w(ks[5], (1, D)),                # graph_gate Linear bias
        jnp.ones((1, D), jnp.float32),   # norm1 weight
        jnp.zeros((1, D), jnp.float32),  # norm1 bias
        jnp.ones((1, D), jnp.float32),   # norm2 weight
        jnp.zeros((1, D), jnp.float32),  # norm2 bias
        w(ks[6], (4 * D, D)),            # ffn Linear1 weight
        w(ks[7], (1, 4 * D)),            # ffn Linear1 bias
        w(ks[8], (D, 4 * D)),            # ffn Linear2 weight
        w(ks[9], (1, D)),                # ffn Linear2 bias
    )

    x = jax.random.normal(ks[10], (B, S, D), dtype=jnp.float32)
    a = jax.random.uniform(ks[11], (B, S, S), dtype=jnp.float32)
    graph = 0.5 * (a + jnp.transpose(a, (0, 2, 1)))       # symmetric nonnegative adjacency

    ref = reference_forward(x, graph, params, H)

    # ---- f32 path (fidelity check) ----
    prepped_f32 = prepare_params(params, H)                # hoisted: prep runs once
    out = jax.block_until_ready(
        graph_guided_transformer_layer(x, graph, prepped_f32, H))
    assert out.shape == (B, S, D)
    assert bool(jnp.all(jnp.isfinite(out)))
    err = float(jnp.max(jnp.abs(out - ref)))
    assert bool(jnp.allclose(out, ref, atol=2e-3, rtol=2e-3)), f"f32 max abs err {err}"

    # ---- bf16 MXU path (v6e/v7x throughput mode: bf16 inputs, f32 accumulate) ----
    prepped_bf16 = prepare_params(params, H, compute_dtype=jnp.bfloat16)
    out_bf16 = jax.block_until_ready(
        graph_guided_transformer_layer(x, graph, prepped_bf16, H))
    assert bool(jnp.all(jnp.isfinite(out_bf16)))
    err16 = float(jnp.max(jnp.abs(out_bf16 - ref)))
    assert bool(jnp.allclose(out_bf16, ref, atol=7.5e-2, rtol=7.5e-2)), \
        f"bf16 max abs err {err16}"

    print("KERNEL_OK")
</pallas_src>

<mosaic_0001>
module attributes {stable_mosaic.version = 11 : i64} {
  func.func @ggt_kernel(%arg0: i32, %arg1: memref<1x8x32xf32, #tpu.memory_space<vmem>>, %arg2: memref<1x8x8xf32, #tpu.memory_space<vmem>>, %arg3: memref<32x96xf32, #tpu.memory_space<vmem>>, %arg4: memref<1x96xf32, #tpu.memory_space<vmem>>, %arg5: memref<32x32xf32, #tpu.memory_space<vmem>>, %arg6: memref<1x32xf32, #tpu.memory_space<vmem>>, %arg7: memref<32x32xf32, #tpu.memory_space<vmem>>, %arg8: memref<32x32xf32, #tpu.memory_space<vmem>>, %arg9: memref<1x32xf32, #tpu.memory_space<vmem>>, %arg10: memref<1x32xf32, #tpu.memory_space<vmem>>, %arg11: memref<1x32xf32, #tpu.memory_space<vmem>>, %arg12: memref<1x32xf32, #tpu.memory_space<vmem>>, %arg13: memref<1x32xf32, #tpu.memory_space<vmem>>, %arg14: memref<32x128xf32, #tpu.memory_space<vmem>>, %arg15: memref<1x128xf32, #tpu.memory_space<vmem>>, %arg16: memref<128x32xf32, #tpu.memory_space<vmem>>, %arg17: memref<1x32xf32, #tpu.memory_space<vmem>>, %arg18: memref<1x8x32xf32, #tpu.memory_space<vmem>>) attributes {dimension_semantics = [#tpu.dimension_semantics<parallel>], iteration_bounds = array<i64: 2>, scalar_prefetch = 0 : i64, scratch_operands = 0 : i64, tpu.core_type = #tpu.core_type<tc>, window_params = [{transform_indices = @transform_0, window_bounds = array<i64: 1, 8, 32>}, {transform_indices = @transform_1, window_bounds = array<i64: 1, 8, 8>}, {pipeline_mode = #tpu.pipeline_mode<synchronous>, transform_indices = @transform_2, window_bounds = array<i64: 32, 96>}, {pipeline_mode = #tpu.pipeline_mode<synchronous>, transform_indices = @transform_3, window_bounds = array<i64: 1, 96>}, {pipeline_mode = #tpu.pipeline_mode<synchronous>, transform_indices = @transform_4, window_bounds = array<i64: 32, 32>}, {pipeline_mode = #tpu.pipeline_mode<synchronous>, transform_indices = @transform_5, window_bounds = array<i64: 1, 32>}, {pipeline_mode = #tpu.pipeline_mode<synchronous>, transform_indices = @transform_6, window_bounds = array<i64: 32, 32>}, {pipeline_mode = #tpu.pipeline_mode<synchronous>, transform_indices = @transform_7, window_bounds = array<i64: 32, 32>}, {pipeline_mode = #tpu.pipeline_mode<synchronous>, transform_indices = @transform_8, window_bounds = array<i64: 1, 32>}, {pipeline_mode = #tpu.pipeline_mode<synchronous>, transform_indices = @transform_9, window_bounds = array<i64: 1, 32>}, {pipeline_mode = #tpu.pipeline_mode<synchronous>, transform_indices = @transform_10, window_bounds = array<i64: 1, 32>}, {pipeline_mode = #tpu.pipeline_mode<synchronous>, transform_indices = @transform_11, window_bounds = array<i64: 1, 32>}, {pipeline_mode = #tpu.pipeline_mode<synchronous>, transform_indices = @transform_12, window_bounds = array<i64: 1, 32>}, {pipeline_mode = #tpu.pipeline_mode<synchronous>, transform_indices = @transform_13, window_bounds = array<i64: 32, 128>}, {pipeline_mode = #tpu.pipeline_mode<synchronous>, transform_indices = @transform_14, window_bounds = array<i64: 1, 128>}, {pipeline_mode = #tpu.pipeline_mode<synchronous>, transform_indices = @transform_15, window_bounds = array<i64: 128, 32>}, {pipeline_mode = #tpu.pipeline_mode<synchronous>, transform_indices = @transform_16, window_bounds = array<i64: 1, 32>}, {transform_indices = @transform_17, window_bounds = array<i64: 1, 8, 32>}]} {
    %c0 = arith.constant 0 : index
    %c0_0 = arith.constant 0 : index
    %c0_1 = arith.constant 0 : index
    %0 = vector.load %arg1[%c0, %c0_0, %c0_1] : memref<1x8x32xf32, #tpu.memory_space<vmem>>, vector<1x8x32xf32>
    %c0_2 = arith.constant 0 : index
    %c0_3 = arith.constant 0 : index
    %c0_4 = arith.constant 0 : index
    %1 = vector.load %arg2[%c0_2, %c0_3, %c0_4] : memref<1x8x8xf32, #tpu.memory_space<vmem>>, vector<1x8x8xf32>
    %2 = vector.shape_cast %0 : vector<1x8x32xf32> to vector<8x32xf32>
    %c0_5 = arith.constant 0 : index
    %c0_6 = arith.constant 0 : index
    %3 = vector.load %arg3[%c0_5, %c0_6] : memref<32x96xf32, #tpu.memory_space<vmem>>, vector<32x96xf32>
    %cst = arith.constant dense<0.000000e+00> : vector<8x96xf32>
    %4 = tpu.matmul %2, %3, %cst {dimension_numbers = #tpu.dot_dimension_numbers<[1], [0], [0], [1], [0, 0, 1, 1], [], []>} : vector<8x32xf32>, vector<32x96xf32>, vector<8x96xf32> -> vector<8x96xf32>
    %c0_7 = arith.constant 0 : index
    %c0_8 = arith.constant 0 : index
    %5 = vector.load %arg4[%c0_7, %c0_8] : memref<1x96xf32, #tpu.memory_space<vmem>>, vector<1x96xf32>
    %6 = vector.shape_cast %5 : vector<1x96xf32> to vector<96xf32>
    %7 = vector.shape_cast %6 : vector<96xf32> to vector<1x96xf32>
    %8 = vector.broadcast %7 : vector<1x96xf32> to vector<8x96xf32>
    %9 = arith.addf %4, %8 : vector<8x96xf32>
    %10 = vector.shape_cast %9 : vector<8x96xf32> to vector<1x8x96xf32>
    %11 = vector.extract_strided_slice %10 {offsets = [0, 0, 0], sizes = [1, 8, 32], strides = [1, 1, 1]} : vector<1x8x96xf32> to vector<1x8x32xf32>
    %12 = vector.extract_strided_slice %10 {offsets = [0, 0, 32], sizes = [1, 8, 32], strides = [1, 1, 1]} : vector<1x8x96xf32> to vector<1x8x32xf32>
    %13 = vector.extract_strided_slice %10 {offsets = [0, 0, 64], sizes = [1, 8, 32], strides = [1, 1, 1]} : vector<1x8x96xf32> to vector<1x8x32xf32>
    %14 = vector.extract_strided_slice %11 {offsets = [0, 0, 0], sizes = [1, 8, 8], strides = [1, 1, 1]} : vector<1x8x32xf32> to vector<1x8x8xf32>
    %15 = vector.extract_strided_slice %12 {offsets = [0, 0, 0], sizes = [1, 8, 8], strides = [1, 1, 1]} : vector<1x8x32xf32> to vector<1x8x8xf32>
    %16 = vector.extract_strided_slice %13 {offsets = [0, 0, 0], sizes = [1, 8, 8], strides = [1, 1, 1]} : vector<1x8x32xf32> to vector<1x8x8xf32>
    "tpu.trace_start"() <{level = 10 : i32, message = "bqe,bke->bqk"}> : () -> ()
    %cst_9 = arith.constant dense<0.000000e+00> : vector<1x8x8xf32>
    %17 = tpu.matmul %14, %15, %cst_9 {dimension_numbers = #tpu.dot_dimension_numbers<[2], [2], [1], [1], [0, 0, 0, 1, 1, 1], [0], [0]>} : vector<1x8x8xf32>, vector<1x8x8xf32>, vector<1x8x8xf32> -> vector<1x8x8xf32>
    "tpu.trace_stop"() : () -> ()
    %cst_10 = arith.constant dense<0xFF800000> : vector<1x8xf32>
    %18 = vector.multi_reduction <maximumf>, %17, %cst_10 [2] : vector<1x8x8xf32> to vector<1x8xf32>
    %19 = vector.shape_cast %18 : vector<1x8xf32> to vector<1x8x1xf32>
    %20 = vector.broadcast %19 : vector<1x8x1xf32> to vector<1x8x8xf32>
    %21 = arith.subf %17, %20 : vector<1x8x8xf32>
    %22 = math.exp %21 : vector<1x8x8xf32>
    %cst_11 = arith.constant dense<0.000000e+00> : vector<1x8xf32>
    %23 = vector.multi_reduction <add>, %22, %cst_11 [2] : vector<1x8x8xf32> to vector<1x8xf32>
    %24 = vector.shape_cast %23 : vector<1x8xf32> to vector<1x8x1xf32>
    %25 = vector.broadcast %24 : vector<1x8x1xf32> to vector<1x8x8xf32>
    %26 = arith.divf %22, %25 : vector<1x8x8xf32>
    "tpu.trace_start"() <{level = 10 : i32, message = "bqk,bke->bqe"}> : () -> ()
    %cst_12 = arith.constant dense<0.000000e+00> : vector<1x8x8xf32>
    %27 = tpu.matmul %26, %16, %cst_12 {dimension_numbers = #tpu.dot_dimension_numbers<[2], [1], [1], [2], [0, 0, 0, 1, 1, 2], [0], [0]>} : vector<1x8x8xf32>, vector<1x8x8xf32>, vector<1x8x8xf32> -> vector<1x8x8xf32>
    "tpu.trace_stop"() : () -> ()
    %28 = vector.extract_strided_slice %11 {offsets = [0, 0, 8], sizes = [1, 8, 8], strides = [1, 1, 1]} : vector<1x8x32xf32> to vector<1x8x8xf32>
    %29 = vector.extract_strided_slice %12 {offsets = [0, 0, 8], sizes = [1, 8, 8], strides = [1, 1, 1]} : vector<1x8x32xf32> to vector<1x8x8xf32>
    %30 = vector.extract_strided_slice %13 {offsets = [0, 0, 8], sizes = [1, 8, 8], strides = [1, 1, 1]} : vector<1x8x32xf32> to vector<1x8x8xf32>
    "tpu.trace_start"() <{level = 10 : i32, message = "bqe,bke->bqk"}> : () -> ()
    %cst_13 = arith.constant dense<0.000000e+00> : vector<1x8x8xf32>
    %31 = tpu.matmul %28, %29, %cst_13 {dimension_numbers = #tpu.dot_dimension_numbers<[2], [2], [1], [1], [0, 0, 0, 1, 1, 1], [0], [0]>} : vector<1x8x8xf32>, vector<1x8x8xf32>, vector<1x8x8xf32> -> vector<1x8x8xf32>
    "tpu.trace_stop"() : () -> ()
    %cst_14 = arith.constant dense<0xFF800000> : vector<1x8xf32>
    %32 = vector.multi_reduction <maximumf>, %31, %cst_14 [2] : vector<1x8x8xf32> to vector<1x8xf32>
    %33 = vector.shape_cast %32 : vector<1x8xf32> to vector<1x8x1xf32>
    %34 = vector.broadcast %33 : vector<1x8x1xf32> to vector<1x8x8xf32>
    %35 = arith.subf %31, %34 : vector<1x8x8xf32>
    %36 = math.exp %35 : vector<1x8x8xf32>
    %cst_15 = arith.constant dense<0.000000e+00> : vector<1x8xf32>
    %37 = vector.multi_reduction <add>, %36, %cst_15 [2] : vector<1x8x8xf32> to vector<1x8xf32>
    %38 = vector.shape_cast %37 : vector<1x8xf32> to vector<1x8x1xf32>
    %39 = vector.broadcast %38 : vector<1x8x1xf32> to vector<1x8x8xf32>
    %40 = arith.divf %36, %39 : vector<1x8x8xf32>
    "tpu.trace_start"() <{level = 10 : i32, message = "bqk,bke->bqe"}> : () -> ()
    %cst_16 = arith.constant dense<0.000000e+00> : vector<1x8x8xf32>
    %41 = tpu.matmul %40, %30, %cst_16 {dimension_numbers = #tpu.dot_dimension_numbers<[2], [1], [1], [2], [0, 0, 0, 1, 1, 2], [0], [0]>} : vector<1x8x8xf32>, vector<1x8x8xf32>, vector<1x8x8xf32> -> vector<1x8x8xf32>
    "tpu.trace_stop"() : () -> ()
    %42 = vector.extract_strided_slice %11 {offsets = [0, 0, 16], sizes = [1, 8, 8], strides = [1, 1, 1]} : vector<1x8x32xf32> to vector<1x8x8xf32>
    %43 = vector.extract_strided_slice %12 {offsets = [0, 0, 16], sizes = [1, 8, 8], strides = [1, 1, 1]} : vector<1x8x32xf32> to vector<1x8x8xf32>
    %44 = vector.extract_strided_slice %13 {offsets = [0, 0, 16], sizes = [1, 8, 8], strides = [1, 1, 1]} : vector<1x8x32xf32> to vector<1x8x8xf32>
    "tpu.trace_start"() <{level = 10 : i32, message = "bqe,bke->bqk"}> : () -> ()
    %cst_17 = arith.constant dense<0.000000e+00> : vector<1x8x8xf32>
    %45 = tpu.matmul %42, %43, %cst_17 {dimension_numbers = #tpu.dot_dimension_numbers<[2], [2], [1], [1], [0, 0, 0, 1, 1, 1], [0], [0]>} : vector<1x8x8xf32>, vector<1x8x8xf32>, vector<1x8x8xf32> -> vector<1x8x8xf32>
    "tpu.trace_stop"() : () -> ()
    %cst_18 = arith.constant dense<0xFF800000> : vector<1x8xf32>
    %46 = vector.multi_reduction <maximumf>, %45, %cst_18 [2] : vector<1x8x8xf32> to vector<1x8xf32>
    %47 = vector.shape_cast %46 : vector<1x8xf32> to vector<1x8x1xf32>
    %48 = vector.broadcast %47 : vector<1x8x1xf32> to vector<1x8x8xf32>
    %49 = arith.subf %45, %48 : vector<1x8x8xf32>
    %50 = math.exp %49 : vector<1x8x8xf32>
    %cst_19 = arith.constant dense<0.000000e+00> : vector<1x8xf32>
    %51 = vector.multi_reduction <add>, %50, %cst_19 [2] : vector<1x8x8xf32> to vector<1x8xf32>
    %52 = vector.shape_cast %51 : vector<1x8xf32> to vector<1x8x1xf32>
    %53 = vector.broadcast %52 : vector<1x8x1xf32> to vector<1x8x8xf32>
    %54 = arith.divf %50, %53 : vector<1x8x8xf32>
    "tpu.trace_start"() <{level = 10 : i32, message = "bqk,bke->bqe"}> : () -> ()
    %cst_20 = arith.constant dense<0.000000e+00> : vector<1x8x8xf32>
    %55 = tpu.matmul %54, %44, %cst_20 {dimension_numbers = #tpu.dot_dimension_numbers<[2], [1], [1], [2], [0, 0, 0, 1, 1, 2], [0], [0]>} : vector<1x8x8xf32>, vector<1x8x8xf32>, vector<1x8x8xf32> -> vector<1x8x8xf32>
    "tpu.trace_stop"() : () -> ()
    %56 = vector.extract_strided_slice %11 {offsets = [0, 0, 24], sizes = [1, 8, 8], strides = [1, 1, 1]} : vector<1x8x32xf32> to vector<1x8x8xf32>
    %57 = vector.extract_strided_slice %12 {offsets = [0, 0, 24], sizes = [1, 8, 8], strides = [1, 1, 1]} : vector<1x8x32xf32> to vector<1x8x8xf32>
    %58 = vector.extract_strided_slice %13 {offsets = [0, 0, 24], sizes = [1, 8, 8], strides = [1, 1, 1]} : vector<1x8x32xf32> to vector<1x8x8xf32>
    "tpu.trace_start"() <{level = 10 : i32, message = "bqe,bke->bqk"}> : () -> ()
    %cst_21 = arith.constant dense<0.000000e+00> : vector<1x8x8xf32>
    %59 = tpu.matmul %56, %57, %cst_21 {dimension_numbers = #tpu.dot_dimension_numbers<[2], [2], [1], [1], [0, 0, 0, 1, 1, 1], [0], [0]>} : vector<1x8x8xf32>, vector<1x8x8xf32>, vector<1x8x8xf32> -> vector<1x8x8xf32>
    "tpu.trace_stop"() : () -> ()
    %cst_22 = arith.constant dense<0xFF800000> : vector<1x8xf32>
    %60 = vector.multi_reduction <maximumf>, %59, %cst_22 [2] : vector<1x8x8xf32> to vector<1x8xf32>
    %61 = vector.shape_cast %60 : vector<1x8xf32> to vector<1x8x1xf32>
    %62 = vector.broadcast %61 : vector<1x8x1xf32> to vector<1x8x8xf32>
    %63 = arith.subf %59, %62 : vector<1x8x8xf32>
    %64 = math.exp %63 : vector<1x8x8xf32>
    %cst_23 = arith.constant dense<0.000000e+00> : vector<1x8xf32>
    %65 = vector.multi_reduction <add>, %64, %cst_23 [2] : vector<1x8x8xf32> to vector<1x8xf32>
    %66 = vector.shape_cast %65 : vector<1x8xf32> to vector<1x8x1xf32>
    %67 = vector.broadcast %66 : vector<1x8x1xf32> to vector<1x8x8xf32>
    %68 = arith.divf %64, %67 : vector<1x8x8xf32>
    "tpu.trace_start"() <{level = 10 : i32, message = "bqk,bke->bqe"}> : () -> ()
    %cst_24 = arith.constant dense<0.000000e+00> : vector<1x8x8xf32>
    %69 = tpu.matmul %68, %58, %cst_24 {dimension_numbers = #tpu.dot_dimension_numbers<[2], [1], [1], [2], [0, 0, 0, 1, 1, 2], [0], [0]>} : vector<1x8x8xf32>, vector<1x8x8xf32>, vector<1x8x8xf32> -> vector<1x8x8xf32>
    "tpu.trace_stop"() : () -> ()
    %70 = tpu.concatenate %27, %41, %55, %69 in 2 : vector<1x8x8xf32>, vector<1x8x8xf32>, vector<1x8x8xf32>, vector<1x8x8xf32> -> vector<1x8x32xf32>
    %71 = vector.shape_cast %70 : vector<1x8x32xf32> to vector<8x32xf32>
    %c0_25 = arith.constant 0 : index
    %c0_26 = arith.constant 0 : index
    %72 = vector.load %arg5[%c0_25, %c0_26] : memref<32x32xf32, #tpu.memory_space<vmem>>, vector<32x32xf32>
    %cst_27 = arith.constant dense<0.000000e+00> : vector<8x32xf32>
    %73 = tpu.matmul %71, %72, %cst_27 {dimension_numbers = #tpu.dot_dimension_numbers<[1], [0], [0], [1], [0, 0, 1, 1], [], []>} : vector<8x32xf32>, vector<32x32xf32>, vector<8x32xf32> -> vector<8x32xf32>
    %c0_28 = arith.constant 0 : index
    %c0_29 = arith.constant 0 : index
    %74 = vector.load %arg6[%c0_28, %c0_29] : memref<1x32xf32, #tpu.memory_space<vmem>>, vector<1x32xf32>
    %75 = vector.shape_cast %74 : vector<1x32xf32> to vector<32xf32>
    %76 = vector.shape_cast %75 : vector<32xf32> to vector<1x32xf32>
    %77 = vector.broadcast %76 : vector<1x32xf32> to vector<8x32xf32>
    %78 = arith.addf %73, %77 : vector<8x32xf32>
    "tpu.trace_start"() <{level = 10 : i32, message = "bij,bjd->bid"}> : () -> ()
    %cst_30 = arith.constant dense<0.000000e+00> : vector<1x8x32xf32>
    %79 = tpu.matmul %1, %0, %cst_30 {dimension_numbers = #tpu.dot_dimension_numbers<[2], [1], [1], [2], [0, 0, 0, 1, 1, 2], [0], [0]>} : vector<1x8x8xf32>, vector<1x8x32xf32>, vector<1x8x32xf32> -> vector<1x8x32xf32>
    "tpu.trace_stop"() : () -> ()
    %80 = vector.shape_cast %79 : vector<1x8x32xf32> to vector<8x32xf32>
    %c0_31 = arith.constant 0 : index
    %c0_32 = arith.constant 0 : index
    %81 = vector.load %arg7[%c0_31, %c0_32] : memref<32x32xf32, #tpu.memory_space<vmem>>, vector<32x32xf32>
    %cst_33 = arith.constant dense<0.000000e+00> : vector<8x32xf32>
    %82 = tpu.matmul %78, %81, %cst_33 {dimension_numbers = #tpu.dot_dimension_numbers<[1], [0], [0], [1], [0, 0, 1, 1], [], []>} : vector<8x32xf32>, vector<32x32xf32>, vector<8x32xf32> -> vector<8x32xf32>
    %c0_34 = arith.constant 0 : index
    %c0_35 = arith.constant 0 : index
    %83 = vector.load %arg8[%c0_34, %c0_35] : memref<32x32xf32, #tpu.memory_space<vmem>>, vector<32x32xf32>
    %cst_36 = arith.constant dense<0.000000e+00> : vector<8x32xf32>
    %84 = tpu.matmul %80, %83, %cst_36 {dimension_numbers = #tpu.dot_dimension_numbers<[1], [0], [0], [1], [0, 0, 1, 1], [], []>} : vector<8x32xf32>, vector<32x32xf32>, vector<8x32xf32> -> vector<8x32xf32>
    %85 = arith.addf %82, %84 : vector<8x32xf32>
    %c0_37 = arith.constant 0 : index
    %c0_38 = arith.constant 0 : index
    %86 = vector.load %arg9[%c0_37, %c0_38] : memref<1x32xf32, #tpu.memory_space<vmem>>, vector<1x32xf32>
    %87 = vector.shape_cast %86 : vector<1x32xf32> to vector<32xf32>
    %88 = vector.shape_cast %87 : vector<32xf32> to vector<1x32xf32>
    %89 = vector.broadcast %88 : vector<1x32xf32> to vector<8x32xf32>
    %90 = arith.addf %85, %89 : vector<8x32xf32>
    %91 = arith.negf %90 : vector<8x32xf32>
    %92 = math.exp %91 : vector<8x32xf32>
    %cst_39 = arith.constant 1.000000e+00 : f32
    %93 = vector.broadcast %cst_39 : f32 to vector<8x32xf32>
    %94 = arith.addf %93, %92 : vector<8x32xf32>
    %95 = arith.divf %93, %94 : vector<8x32xf32>
    %96 = arith.mulf %95, %78 : vector<8x32xf32>
    %cst_40 = arith.constant 1.000000e+00 : f32
    %97 = vector.broadcast %cst_40 : f32 to vector<8x32xf32>
    %98 = arith.subf %97, %95 : vector<8x32xf32>
    %99 = arith.mulf %98, %80 : vector<8x32xf32>
    %100 = arith.addf %96, %99 : vector<8x32xf32>
    %101 = arith.addf %2, %100 : vector<8x32xf32>
    %c0_41 = arith.constant 0 : index
    %c0_42 = arith.constant 0 : index
    %102 = vector.load %arg10[%c0_41, %c0_42] : memref<1x32xf32, #tpu.memory_space<vmem>>, vector<1x32xf32>
    %103 = vector.shape_cast %102 : vector<1x32xf32> to vector<32xf32>
    %c0_43 = arith.constant 0 : index
    %c0_44 = arith.constant 0 : index
    %104 = vector.load %arg11[%c0_43, %c0_44] : memref<1x32xf32, #tpu.memory_space<vmem>>, vector<1x32xf32>
    %105 = vector.shape_cast %104 : vector<1x32xf32> to vector<32xf32>
    %cst_45 = arith.constant dense<0.000000e+00> : vector<8xf32>
    %106 = vector.multi_reduction <add>, %101, %cst_45 [1] : vector<8x32xf32> to vector<8xf32>
    %107 = vector.shape_cast %106 : vector<8xf32> to vector<8x1xf32>
    %cst_46 = arith.constant 3.200000e+01 : f32
    %108 = vector.broadcast %cst_46 : f32 to vector<8x1xf32>
    %109 = arith.divf %107, %108 : vector<8x1xf32>
    %110 = vector.broadcast %109 : vector<8x1xf32> to vector<8x32xf32>
    %111 = arith.subf %101, %110 : vector<8x32xf32>
    %112 = arith.mulf %111, %111 : vector<8x32xf32>
    %cst_47 = arith.constant dense<0.000000e+00> : vector<8xf32>
    %113 = vector.multi_reduction <add>, %112, %cst_47 [1] : vector<8x32xf32> to vector<8xf32>
    %114 = vector.shape_cast %113 : vector<8xf32> to vector<8x1xf32>
    %cst_48 = arith.constant 3.200000e+01 : f32
    %115 = vector.broadcast %cst_48 : f32 to vector<8x1xf32>
    %116 = arith.divf %114, %115 : vector<8x1xf32>
    %cst_49 = arith.constant 9.99999974E-6 : f32
    %117 = vector.broadcast %cst_49 : f32 to vector<8x1xf32>
    %118 = arith.addf %116, %117 : vector<8x1xf32>
    %119 = math.rsqrt %118 : vector<8x1xf32>
    %120 = vector.broadcast %119 : vector<8x1xf32> to vector<8x32xf32>
    %121 = arith.mulf %111, %120 : vector<8x32xf32>
    %122 = vector.shape_cast %103 : vector<32xf32> to vector<1x32xf32>
    %123 = vector.broadcast %122 : vector<1x32xf32> to vector<8x32xf32>
    %124 = arith.mulf %121, %123 : vector<8x32xf32>
    %125 = vector.shape_cast %105 : vector<32xf32> to vector<1x32xf32>
    %126 = vector.broadcast %125 : vector<1x32xf32> to vector<8x32xf32>
    %127 = arith.addf %124, %126 : vector<8x32xf32>
    %c0_50 = arith.constant 0 : index
    %c0_51 = arith.constant 0 : index
    %128 = vector.load %arg14[%c0_50, %c0_51] : memref<32x128xf32, #tpu.memory_space<vmem>>, vector<32x128xf32>
    %cst_52 = arith.constant dense<0.000000e+00> : vector<8x128xf32>
    %129 = tpu.matmul %127, %128, %cst_52 {dimension_numbers = #tpu.dot_dimension_numbers<[1], [0], [0], [1], [0, 0, 1, 1], [], []>} : vector<8x32xf32>, vector<32x128xf32>, vector<8x128xf32> -> vector<8x128xf32>
    %c0_53 = arith.constant 0 : index
    %c0_54 = arith.constant 0 : index
    %130 = vector.load %arg15[%c0_53, %c0_54] : memref<1x128xf32, #tpu.memory_space<vmem>>, vector<1x128xf32>
    %131 = vector.shape_cast %130 : vector<1x128xf32> to vector<128xf32>
    %132 = vector.shape_cast %131 : vector<128xf32> to vector<1x128xf32>
    %133 = vector.broadcast %132 : vector<1x128xf32> to vector<8x128xf32>
    %134 = arith.addf %129, %133 : vector<8x128xf32>
    %cst_55 = arith.constant 5.000000e-01 : f32
    %135 = vector.broadcast %cst_55 : f32 to vector<8x128xf32>
    %136 = arith.mulf %135, %134 : vector<8x128xf32>
    %cst_56 = arith.constant 0.707106769 : f32
    %137 = vector.broadcast %cst_56 : f32 to vector<8x128xf32>
    %138 = arith.mulf %134, %137 : vector<8x128xf32>
    %139 = math.erf %138 : vector<8x128xf32>
    %cst_57 = arith.constant 1.000000e+00 : f32
    %140 = vector.broadcast %cst_57 : f32 to vector<8x128xf32>
    %141 = arith.addf %140, %139 : vector<8x128xf32>
    %142 = arith.mulf %136, %141 : vector<8x128xf32>
    %c0_58 = arith.constant 0 : index
    %c0_59 = arith.constant 0 : index
    %143 = vector.load %arg16[%c0_58, %c0_59] : memref<128x32xf32, #tpu.memory_space<vmem>>, vector<128x32xf32>
    %cst_60 = arith.constant dense<0.000000e+00> : vector<8x32xf32>
    %144 = tpu.matmul %142, %143, %cst_60 {dimension_numbers = #tpu.dot_dimension_numbers<[1], [0], [0], [1], [0, 0, 1, 1], [], []>} : vector<8x128xf32>, vector<128x32xf32>, vector<8x32xf32> -> vector<8x32xf32>
    %c0_61 = arith.constant 0 : index
    %c0_62 = arith.constant 0 : index
    %145 = vector.load %arg17[%c0_61, %c0_62] : memref<1x32xf32, #tpu.memory_space<vmem>>, vector<1x32xf32>
    %146 = vector.shape_cast %145 : vector<1x32xf32> to vector<32xf32>
    %147 = vector.shape_cast %146 : vector<32xf32> to vector<1x32xf32>
    %148 = vector.broadcast %147 : vector<1x32xf32> to vector<8x32xf32>
    %149 = arith.addf %144, %148 : vector<8x32xf32>
    %150 = arith.addf %127, %149 : vector<8x32xf32>
    %c0_63 = arith.constant 0 : index
    %c0_64 = arith.constant 0 : index
    %151 = vector.load %arg12[%c0_63, %c0_64] : memref<1x32xf32, #tpu.memory_space<vmem>>, vector<1x32xf32>
    %152 = vector.shape_cast %151 : vector<1x32xf32> to vector<32xf32>
    %c0_65 = arith.constant 0 : index
    %c0_66 = arith.constant 0 : index
    %153 = vector.load %arg13[%c0_65, %c0_66] : memref<1x32xf32, #tpu.memory_space<vmem>>, vector<1x32xf32>
    %154 = vector.shape_cast %153 : vector<1x32xf32> to vector<32xf32>
    %cst_67 = arith.constant dense<0.000000e+00> : vector<8xf32>
    %155 = vector.multi_reduction <add>, %150, %cst_67 [1] : vector<8x32xf32> to vector<8xf32>
    %156 = vector.shape_cast %155 : vector<8xf32> to vector<8x1xf32>
    %cst_68 = arith.constant 3.200000e+01 : f32
    %157 = vector.broadcast %cst_68 : f32 to vector<8x1xf32>
    %158 = arith.divf %156, %157 : vector<8x1xf32>
    %159 = vector.broadcast %158 : vector<8x1xf32> to vector<8x32xf32>
    %160 = arith.subf %150, %159 : vector<8x32xf32>
    %161 = arith.mulf %160, %160 : vector<8x32xf32>
    %cst_69 = arith.constant dense<0.000000e+00> : vector<8xf32>
    %162 = vector.multi_reduction <add>, %161, %cst_69 [1] : vector<8x32xf32> to vector<8xf32>
    %163 = vector.shape_cast %162 : vector<8xf32> to vector<8x1xf32>
    %cst_70 = arith.constant 3.200000e+01 : f32
    %164 = vector.broadcast %cst_70 : f32 to vector<8x1xf32>
    %165 = arith.divf %163, %164 : vector<8x1xf32>
    %cst_71 = arith.constant 9.99999974E-6 : f32
    %166 = vector.broadcast %cst_71 : f32 to vector<8x1xf32>
    %167 = arith.addf %165, %166 : vector<8x1xf32>
    %168 = math.rsqrt %167 : vector<8x1xf32>
    %169 = vector.broadcast %168 : vector<8x1xf32> to vector<8x32xf32>
    %170 = arith.mulf %160, %169 : vector<8x32xf32>
    %171 = vector.shape_cast %152 : vector<32xf32> to vector<1x32xf32>
    %172 = vector.broadcast %171 : vector<1x32xf32> to vector<8x32xf32>
    %173 = arith.mulf %170, %172 : vector<8x32xf32>
    %174 = vector.shape_cast %154 : vector<32xf32> to vector<1x32xf32>
    %175 = vector.broadcast %174 : vector<1x32xf32> to vector<8x32xf32>
    %176 = arith.addf %173, %175 : vector<8x32xf32>
    %177 = vector.shape_cast %176 : vector<8x32xf32> to vector<1x8x32xf32>
    %c0_72 = arith.constant 0 : index
    %c0_73 = arith.constant 0 : index
    %c0_74 = arith.constant 0 : index
    %178 = vector.load %arg18[%c0_72, %c0_73, %c0_74] : memref<1x8x32xf32, #tpu.memory_space<vmem>>, vector<1x8x32xf32>
    tpu.vector_store %arg18[%c0_72, %c0_73, %c0_74], %177 {strides = array<i32>} : memref<1x8x32xf32, #tpu.memory_space<vmem>>, vector<1x8x32xf32>,
    return
  }
  func.func @transform_0(%arg0: i32) -> (i32, i32, i32) {
    %c0_i32 = arith.constant 0 : i32
    %c0_i32_0 = arith.constant 0 : i32
    %c0_i32_1 = arith.constant 0 : i32
    return %arg0, %c0_i32, %c0_i32_0 : i32, i32, i32
  }
  func.func @transform_1(%arg0: i32) -> (i32, i32, i32) {
    %c0_i32 = arith.constant 0 : i32
    %c0_i32_0 = arith.constant 0 : i32
    %c0_i32_1 = arith.constant 0 : i32
    return %arg0, %c0_i32, %c0_i32_0 : i32, i32, i32
  }
  func.func @transform_2(%arg0: i32) -> (i32, i32) {
    %c0_i32 = arith.constant 0 : i32
    %c0_i32_0 = arith.constant 0 : i32
    %c0_i32_1 = arith.constant 0 : i32
    return %c0_i32, %c0_i32_0 : i32, i32
  }
  func.func @transform_3(%arg0: i32) -> (i32, i32) {
    %c0_i32 = arith.constant 0 : i32
    %c0_i32_0 = arith.constant 0 : i32
    %c0_i32_1 = arith.constant 0 : i32
    return %c0_i32, %c0_i32_0 : i32, i32
  }
  func.func @transform_4(%arg0: i32) -> (i32, i32) {
    %c0_i32 = arith.constant 0 : i32
    %c0_i32_0 = arith.constant 0 : i32
    %c0_i32_1 = arith.constant 0 : i32
    return %c0_i32, %c0_i32_0 : i32, i32
  }
  func.func @transform_5(%arg0: i32) -> (i32, i32) {
    %c0_i32 = arith.constant 0 : i32
    %c0_i32_0 = arith.constant 0 : i32
    %c0_i32_1 = arith.constant 0 : i32
    return %c0_i32, %c0_i32_0 : i32, i32
  }
  func.func @transform_6(%arg0: i32) -> (i32, i32) {
    %c0_i32 = arith.constant 0 : i32
    %c0_i32_0 = arith.constant 0 : i32
    %c0_i32_1 = arith.constant 0 : i32
    return %c0_i32, %c0_i32_0 : i32, i32
  }
  func.func @transform_7(%arg0: i32) -> (i32, i32) {
    %c0_i32 = arith.constant 0 : i32
    %c0_i32_0 = arith.constant 0 : i32
    %c0_i32_1 = arith.constant 0 : i32
    return %c0_i32, %c0_i32_0 : i32, i32
  }
  func.func @transform_8(%arg0: i32) -> (i32, i32) {
    %c0_i32 = arith.constant 0 : i32
    %c0_i32_0 = arith.constant 0 : i32
    %c0_i32_1 = arith.constant 0 : i32
    return %c0_i32, %c0_i32_0 : i32, i32
  }
  func.func @transform_9(%arg0: i32) -> (i32, i32) {
    %c0_i32 = arith.constant 0 : i32
    %c0_i32_0 = arith.constant 0 : i32
    %c0_i32_1 = arith.constant 0 : i32
    return %c0_i32, %c0_i32_0 : i32, i32
  }
  func.func @transform_10(%arg0: i32) -> (i32, i32) {
    %c0_i32 = arith.constant 0 : i32
    %c0_i32_0 = arith.constant 0 : i32
    %c0_i32_1 = arith.constant 0 : i32
    return %c0_i32, %c0_i32_0 : i32, i32
  }
  func.func @transform_11(%arg0: i32) -> (i32, i32) {
    %c0_i32 = arith.constant 0 : i32
    %c0_i32_0 = arith.constant 0 : i32
    %c0_i32_1 = arith.constant 0 : i32
    return %c0_i32, %c0_i32_0 : i32, i32
  }
  func.func @transform_12(%arg0: i32) -> (i32, i32) {
    %c0_i32 = arith.constant 0 : i32
    %c0_i32_0 = arith.constant 0 : i32
    %c0_i32_1 = arith.constant 0 : i32
    return %c0_i32, %c0_i32_0 : i32, i32
  }
  func.func @transform_13(%arg0: i32) -> (i32, i32) {
    %c0_i32 = arith.constant 0 : i32
    %c0_i32_0 = arith.constant 0 : i32
    %c0_i32_1 = arith.constant 0 : i32
    return %c0_i32, %c0_i32_0 : i32, i32
  }
  func.func @transform_14(%arg0: i32) -> (i32, i32) {
    %c0_i32 = arith.constant 0 : i32
    %c0_i32_0 = arith.constant 0 : i32
    %c0_i32_1 = arith.constant 0 : i32
    return %c0_i32, %c0_i32_0 : i32, i32
  }
  func.func @transform_15(%arg0: i32) -> (i32, i32) {
    %c0_i32 = arith.constant 0 : i32
    %c0_i32_0 = arith.constant 0 : i32
    %c0_i32_1 = arith.constant 0 : i32
    return %c0_i32, %c0_i32_0 : i32, i32
  }
  func.func @transform_16(%arg0: i32) -> (i32, i32) {
    %c0_i32 = arith.constant 0 : i32
    %c0_i32_0 = arith.constant 0 : i32
    %c0_i32_1 = arith.constant 0 : i32
    return %c0_i32, %c0_i32_0 : i32, i32
  }
  func.func @transform_17(%arg0: i32) -> (i32, i32, i32) {
    %c0_i32 = arith.constant 0 : i32
    %c0_i32_0 = arith.constant 0 : i32
    %c0_i32_1 = arith.constant 0 : i32
    return %arg0, %c0_i32, %c0_i32_0 : i32, i32, i32
  }
}

</mosaic_0001>

<llo_original>
// kernel: tpu_custom_call.1
$region0: #{tpu_custom_call.1}
  #allocation0 [shape = 'u32[]', space=smem, size = 0x4, offset = 0x4, fixed_abs, tag = 'smem constant byte address 0x4 - core index']
  #allocation1 [shape = 'u32[144,128]{1,0:T(1,128)}', space=vmem, size = 0x12000, scoped, tag = 'internal scratch']
  %s0 = inlined_call_operand.hbm [shape: f32[2,8,32], index: 0, kind: input, shape index: {}]
  %s1 = inlined_call_operand.hbm [shape: f32[2,8,8], index: 1, kind: input, shape index: {}]
  %s2 = inlined_call_operand.vmem [shape: f32[32,96], index: 2, kind: input, shape index: {}]
  %s3 = inlined_call_operand.vmem [shape: f32[1,96], index: 3, kind: input, shape index: {}]
  %s4 = inlined_call_operand.vmem [shape: f32[32,32], index: 4, kind: input, shape index: {}]
  %s5 = inlined_call_operand.vmem [shape: f32[1,32], index: 5, kind: input, shape index: {}]
  %s6 = inlined_call_operand.vmem [shape: f32[32,32], index: 6, kind: input, shape index: {}]
  %s7 = inlined_call_operand.vmem [shape: f32[32,32], index: 7, kind: input, shape index: {}]
  %s8 = inlined_call_operand.vmem [shape: f32[1,32], index: 8, kind: input, shape index: {}]
  %s9 = inlined_call_operand.vmem [shape: f32[1,32], index: 9, kind: input, shape index: {}]
  %s10 = inlined_call_operand.vmem [shape: f32[1,32], index: 10, kind: input, shape index: {}]
  %s11 = inlined_call_operand.vmem [shape: f32[1,32], index: 11, kind: input, shape index: {}]
  %s12 = inlined_call_operand.vmem [shape: f32[1,32], index: 12, kind: input, shape index: {}]
  %s13 = inlined_call_operand.vmem [shape: f32[32,128], index: 13, kind: input, shape index: {}]
  %s14 = inlined_call_operand.vmem [shape: f32[1,128], index: 14, kind: input, shape index: {}]
  %s15 = inlined_call_operand.vmem [shape: f32[128,32], index: 15, kind: input, shape index: {}]
  %s16 = inlined_call_operand.vmem [shape: f32[1,32], index: 16, kind: input, shape index: {}]
  %s17 = inlined_call_operand.hbm [shape: f32[2,8,32], index: 17, kind: output, shape index: {}]
  %s18 = sld [smem:[#allocation0]]
  $region109: #{tpu_custom_call.1} parent=0
    _
  %s20 = ssub.s32 1, %s18
  %s21 = scalar_select 0, %s20, %s18
  $region1: #{tpu_custom_call.1} parent=0
    #allocation2 [shape = 'u8[8192]{0}', space=vmem, size = 0x2000, scoped, tag = 'input window, operand 0']
    #allocation3 [shape = 's32[2]{0}', space=sflag, size = 0x8, scoped, tag = 'scoped memory for tpu_custom_call.1']
    #allocation4 [shape = 's32[2]{0}', space=sflag, size = 0x8, scoped, tag = 'scoped memory for tpu_custom_call.1']
    #allocation5 [shape = 'u8[8192]{0}', space=vmem, size = 0x2000, scoped, tag = 'input window, operand 1']
    #allocation6 [shape = 's32[2]{0}', space=sflag, size = 0x8, scoped, tag = 'scoped memory for tpu_custom_call.1']
    #allocation7 [shape = 'u8[8192]{0}', space=vmem, size = 0x2000, scoped, tag = 'output window, operand 0']
    %22 = vsyncpa [#allocation3], 0
    %s23 = scalar_lea.sflag [#allocation3], 1
    %24 = vsyncpa %s23, 0
    %25 = vsyncpa [#allocation6], 0
    %s26 = scalar_lea.sflag [#allocation6], 1
    %27 = vsyncpa %s26, 0
    %28 = vsyncpa [#allocation4], 0
    %s29 = scalar_lea.sflag [#allocation4], 1
    %30 = vsyncpa %s29, 0
    loop: start=0, step=1, limit=4
    $region2: #{tpu_custom_call.1} parent=1 // loop_pre_header
      _
    $region3: #{tpu_custom_call.1} parent=1 // loop_header
      %s32 = sphi 0, %s36
      %p33 = scmp.ge.s32.totalorder %s32, 4
      %s42 = sphi 0, %s44
      %s45 = sphi 0, %s42
      %s46 = sphi 0, %s45
      %s62 = sphi 0, %s46
      %s68 = sphi 0, %s70
      %s71 = sphi 0, %s68
      %s72 = sphi 0, %s71
      %s88 = sphi 0, %s72
      %s92 = sphi 0, %s92
      %s94 = sphi 0, %s92
      %s95 = sphi 0, %s94
      %s109 = sphi 0, %s95
      %s113 = sphi 0, %s113
      %s115 = sphi 0, %s113
      %s116 = sphi 0, %s115
      %s130 = sphi 0, %s116
      %s134 = sphi 0, %s134
      %s136 = sphi 0, %s134
      %s137 = sphi 0, %s136
      %s151 = sphi 0, %s137
      %s155 = sphi 0, %s155
      %s157 = sphi 0, %s155
      %s158 = sphi 0, %s157
      %s172 = sphi 0, %s158
      %s176 = sphi 0, %s176
      %s178 = sphi 0, %s176
      %s179 = sphi 0, %s178
      %s193 = sphi 0, %s179
      %s197 = sphi 0, %s197
      %s199 = sphi 0, %s197
      %s200 = sphi 0, %s199
      %s214 = sphi 0, %s200
      %s218 = sphi 0, %s218
      %s220 = sphi 0, %s218
      %s221 = sphi 0, %s220
      %s235 = sphi 0, %s221
      %s239 = sphi 0, %s239
      %s241 = sphi 0, %s239
      %s242 = sphi 0, %s241
      %s256 = sphi 0, %s242
      %s260 = sphi 0, %s260
      %s262 = sphi 0, %s260
      %s263 = sphi 0, %s262
      %s277 = sphi 0, %s263
      %s281 = sphi 0, %s281
      %s283 = sphi 0, %s281
      %s284 = sphi 0, %s283
      %s298 = sphi 0, %s284
      %s302 = sphi 0, %s302
      %s304 = sphi 0, %s302
      %s305 = sphi 0, %s304
      %s319 = sphi 0, %s305
      %s323 = sphi 0, %s323
      %s325 = sphi 0, %s323
      %s326 = sphi 0, %s325
      %s340 = sphi 0, %s326
      %s344 = sphi 0, %s344
      %s346 = sphi 0, %s344
      %s347 = sphi 0, %s346
      %s361 = sphi 0, %s347
      %s365 = sphi 0, %s365
      %s367 = sphi 0, %s365
      %s368 = sphi 0, %s367
      %s382 = sphi 0, %s368
      %s386 = sphi 0, %s386
      %s388 = sphi 0, %s386
      %s389 = sphi 0, %s388
      %s403 = sphi 0, %s389
      %s409 = sphi 0, %s411
      %s412 = sphi 0, %s409
      %s413 = sphi 0, %s412
      %s429 = sphi 0, %s413
    $region4: #{tpu_custom_call.1} parent=1 // loop_header_branch
      %35 = sbr.rel (%p33) target = $region8
    $region5: #{tpu_custom_call.1} parent=1 // loop_body
      %s37 = ssub.s32 %s32, 1
      %s38 = ssub.s32 %s32, 2
      %s39 = sadd.s32 %s32, 1
      %s40 = ssub.s32 %s32, %s39
      %p41 = scmp.eq.s32.totalorder %s40, 0
      %s43 = sadd.s32 %s42, 1
      %s44 = scalar_select %p41, %s42, %s43
      %p47 = pneg %p41
      %p48 = scmp.eq.s32.totalorder %s32, 1
      %p49 = por %p47, %p48
      %p50 = scmp.ne.s32.totalorder %s42, %s45
      %p51 = scmp.eq.s32.totalorder %s32, 0
      %p52 = por %p50, %p51
      %p53 = scmp.ne.s32.totalorder %s42, %s45
      %p54 = scmp.eq.s32.totalorder %s37, 1
      %p55 = por %p53, %p54
      %p56 = scmp.ne.s32.totalorder %s45, %s46
      %p57 = scmp.eq.s32.totalorder %s37, 0
      %p58 = por %p56, %p57
      %p59 = scmp.ne.s32.totalorder %s45, %s46
      %p60 = scmp.eq.s32.totalorder %s38, 1
      %p61 = por %p59, %p60
      %p63 = scmp.ne.s32.totalorder %s46, %s62
      %p64 = scmp.eq.s32.totalorder %s38, 0
      %p65 = por %p63, %p64
      %s66 = ssub.s32 %s32, %s39
      %p67 = scmp.eq.s32.totalorder %s66, 0
      %s69 = sadd.s32 %s68, 1
      %s70 = scalar_select %p67, %s68, %s69
      %p73 = pneg %p67
      %p74 = scmp.eq.s32.totalorder %s32, 1
      %p75 = por %p73, %p74
      %p76 = scmp.ne.s32.totalorder %s68, %s71
      %p77 = scmp.eq.s32.totalorder %s32, 0
      %p78 = por %p76, %p77
      %p79 = scmp.ne.s32.totalorder %s68, %s71
      %p80 = scmp.eq.s32.totalorder %s37, 1
      %p81 = por %p79, %p80
      %p82 = scmp.ne.s32.totalorder %s71, %s72
      %p83 = scmp.eq.s32.totalorder %s37, 0
      %p84 = por %p82, %p83
      %p85 = scmp.ne.s32.totalorder %s71, %s72
      %p86 = scmp.eq.s32.totalorder %s38, 1
      %p87 = por %p85, %p86
      %p89 = scmp.ne.s32.totalorder %s72, %s88
      %p90 = scmp.eq.s32.totalorder %s38, 0
      %p91 = por %p89, %p90
      %s93 = sadd.s32 %s92, 1
      %p96 = scmp.eq.s32.totalorder %s32, 1
      %p97 = scmp.ne.s32.totalorder %s92, %s94
      %p98 = scmp.eq.s32.totalorder %s32, 0
      %p99 = por %p97, %p98
      %p100 = scmp.ne.s32.totalorder %s92, %s94
      %p101 = scmp.eq.s32.totalorder %s37, 1
      %p102 = por %p100, %p101
      %p103 = scmp.ne.s32.totalorder %s94, %s95
      %p104 = scmp.eq.s32.totalorder %s37, 0
      %p105 = por %p103, %p104
      %p106 = scmp.ne.s32.totalorder %s94, %s95
      %p107 = scmp.eq.s32.totalorder %s38, 1
      %p108 = por %p106, %p107
      %p110 = scmp.ne.s32.totalorder %s95, %s109
      %p111 = scmp.eq.s32.totalorder %s38, 0
      %p112 = por %p110, %p111
      %s114 = sadd.s32 %s113, 1
      %p117 = scmp.eq.s32.totalorder %s32, 1
      %p118 = scmp.ne.s32.totalorder %s113, %s115
      %p119 = scmp.eq.s32.totalorder %s32, 0
      %p120 = por %p118, %p119
      %p121 = scmp.ne.s32.totalorder %s113, %s115
      %p122 = scmp.eq.s32.totalorder %s37, 1
      %p123 = por %p121, %p122
      %p124 = scmp.ne.s32.totalorder %s115, %s116
      %p125 = scmp.eq.s32.totalorder %s37, 0
      %p126 = por %p124, %p125
      %p127 = scmp.ne.s32.totalorder %s115, %s116
      %p128 = scmp.eq.s32.totalorder %s38, 1
      %p129 = por %p127, %p128
      %p131 = scmp.ne.s32.totalorder %s116, %s130
      %p132 = scmp.eq.s32.totalorder %s38, 0
      %p133 = por %p131, %p132
      %s135 = sadd.s32 %s134, 1
      %p138 = scmp.eq.s32.totalorder %s32, 1
      %p139 = scmp.ne.s32.totalorder %s134, %s136
      %p140 = scmp.eq.s32.totalorder %s32, 0
      %p141 = por %p139, %p140
      %p142 = scmp.ne.s32.totalorder %s134, %s136
      %p143 = scmp.eq.s32.totalorder %s37, 1
      %p144 = por %p142, %p143
      %p145 = scmp.ne.s32.totalorder %s136, %s137
      %p146 = scmp.eq.s32.totalorder %s37, 0
      %p147 = por %p145, %p146
      %p148 = scmp.ne.s32.totalorder %s136, %s137
      %p149 = scmp.eq.s32.totalorder %s38, 1
      %p150 = por %p148, %p149
      %p152 = scmp.ne.s32.totalorder %s137, %s151
      %p153 = scmp.eq.s32.totalorder %s38, 0
      %p154 = por %p152, %p153
      %s156 = sadd.s32 %s155, 1
      %p159 = scmp.eq.s32.totalorder %s32, 1
      %p160 = scmp.ne.s32.totalorder %s155, %s157
      %p161 = scmp.eq.s32.totalorder %s32, 0
      %p162 = por %p160, %p161
      %p163 = scmp.ne.s32.totalorder %s155, %s157
      %p164 = scmp.eq.s32.totalorder %s37, 1
      %p165 = por %p163, %p164
      %p166 = scmp.ne.s32.totalorder %s157, %s158
      %p167 = scmp.eq.s32.totalorder %s37, 0
      %p168 = por %p166, %p167
      %p169 = scmp.ne.s32.totalorder %s157, %s158
      %p170 = scmp.eq.s32.totalorder %s38, 1
      %p171 = por %p169, %p170
      %p173 = scmp.ne.s32.totalorder %s158, %s172
      %p174 = scmp.eq.s32.totalorder %s38, 0
      %p175 = por %p173, %p174
      %s177 = sadd.s32 %s176, 1
      %p180 = scmp.eq.s32.totalorder %s32, 1
      %p181 = scmp.ne.s32.totalorder %s176, %s178
      %p182 = scmp.eq.s32.totalorder %s32, 0
      %p183 = por %p181, %p182
      %p184 = scmp.ne.s32.totalorder %s176, %s178
      %p185 = scmp.eq.s32.totalorder %s37, 1
      %p186 = por %p184, %p185
      %p187 = scmp.ne.s32.totalorder %s178, %s179
      %p188 = scmp.eq.s32.totalorder %s37, 0
      %p189 = por %p187, %p188
      %p190 = scmp.ne.s32.totalorder %s178, %s179
      %p191 = scmp.eq.s32.totalorder %s38, 1
      %p192 = por %p190, %p191
      %p194 = scmp.ne.s32.totalorder %s179, %s193
      %p195 = scmp.eq.s32.totalorder %s38, 0
      %p196 = por %p194, %p195
      %s198 = sadd.s32 %s197, 1
      %p201 = scmp.eq.s32.totalorder %s32, 1
      %p202 = scmp.ne.s32.totalorder %s197, %s199
      %p203 = scmp.eq.s32.totalorder %s32, 0
      %p204 = por %p202, %p203
      %p205 = scmp.ne.s32.totalorder %s197, %s199
      %p206 = scmp.eq.s32.totalorder %s37, 1
      %p207 = por %p205, %p206
      %p208 = scmp.ne.s32.totalorder %s199, %s200
      %p209 = scmp.eq.s32.totalorder %s37, 0
      %p210 = por %p208, %p209
      %p211 = scmp.ne.s32.totalorder %s199, %s200
      %p212 = scmp.eq.s32.totalorder %s38, 1
      %p213 = por %p211, %p212
      %p215 = scmp.ne.s32.totalorder %s200, %s214
      %p216 = scmp.eq.s32.totalorder %s38, 0
      %p217 = por %p215, %p216
      %s219 = sadd.s32 %s218, 1
      %p222 = scmp.eq.s32.totalorder %s32, 1
      %p223 = scmp.ne.s32.totalorder %s218, %s220
      %p224 = scmp.eq.s32.totalorder %s32, 0
      %p225 = por %p223, %p224
      %p226 = scmp.ne.s32.totalorder %s218, %s220
      %p227 = scmp.eq.s32.totalorder %s37, 1
      %p228 = por %p226, %p227
      %p229 = scmp.ne.s32.totalorder %s220, %s221
      %p230 = scmp.eq.s32.totalorder %s37, 0
      %p231 = por %p229, %p230
      %p232 = scmp.ne.s32.totalorder %s220, %s221
      %p233 = scmp.eq.s32.totalorder %s38, 1
      %p234 = por %p232, %p233
      %p236 = scmp.ne.s32.totalorder %s221, %s235
      %p237 = scmp.eq.s32.totalorder %s38, 0
      %p238 = por %p236, %p237
      %s240 = sadd.s32 %s239, 1
      %p243 = scmp.eq.s32.totalorder %s32, 1
      %p244 = scmp.ne.s32.totalorder %s239, %s241
      %p245 = scmp.eq.s32.totalorder %s32, 0
      %p246 = por %p244, %p245
      %p247 = scmp.ne.s32.totalorder %s239, %s241
      %p248 = scmp.eq.s32.totalorder %s37, 1
      %p249 = por %p247, %p248
      %p250 = scmp.ne.s32.totalorder %s241, %s242
      %p251 = scmp.eq.s32.totalorder %s37, 0
      %p252 = por %p250, %p251
      %p253 = scmp.ne.s32.totalorder %s241, %s242
      %p254 = scmp.eq.s32.totalorder %s38, 1
      %p255 = por %p253, %p254
      %p257 = scmp.ne.s32.totalorder %s242, %s256
      %p258 = scmp.eq.s32.totalorder %s38, 0
      %p259 = por %p257, %p258
      %s261 = sadd.s32 %s260, 1
      %p264 = scmp.eq.s32.totalorder %s32, 1
      %p265 = scmp.ne.s32.totalorder %s260, %s262
      %p266 = scmp.eq.s32.totalorder %s32, 0
      %p267 = por %p265, %p266
      %p268 = scmp.ne.s32.totalorder %s260, %s262
      %p269 = scmp.eq.s32.totalorder %s37, 1
      %p270 = por %p268, %p269
      %p271 = scmp.ne.s32.totalorder %s262, %s263
      %p272 = scmp.eq.s32.totalorder %s37, 0
      %p273 = por %p271, %p272
      %p274 = scmp.ne.s32.totalorder %s262, %s263
      %p275 = scmp.eq.s32.totalorder %s38, 1
      %p276 = por %p274, %p275
      %p278 = scmp.ne.s32.totalorder %s263, %s277
      %p279 = scmp.eq.s32.totalorder %s38, 0
      %p280 = por %p278, %p279
      %s282 = sadd.s32 %s281, 1
      %p285 = scmp.eq.s32.totalorder %s32, 1
      %p286 = scmp.ne.s32.totalorder %s281, %s283
      %p287 = scmp.eq.s32.totalorder %s32, 0
      %p288 = por %p286, %p287
      %p289 = scmp.ne.s32.totalorder %s281, %s283
      %p290 = scmp.eq.s32.totalorder %s37, 1
      %p291 = por %p289, %p290
      %p292 = scmp.ne.s32.totalorder %s283, %s284
      %p293 = scmp.eq.s32.totalorder %s37, 0
      %p294 = por %p292, %p293
      %p295 = scmp.ne.s32.totalorder %s283, %s284
      %p296 = scmp.eq.s32.totalorder %s38, 1
      %p297 = por %p295, %p296
      %p299 = scmp.ne.s32.totalorder %s284, %s298
      %p300 = scmp.eq.s32.totalorder %s38, 0
      %p301 = por %p299, %p300
      %s303 = sadd.s32 %s302, 1
      %p306 = scmp.eq.s32.totalorder %s32, 1
      %p307 = scmp.ne.s32.totalorder %s302, %s304
      %p308 = scmp.eq.s32.totalorder %s32, 0
      %p309 = por %p307, %p308
      %p310 = scmp.ne.s32.totalorder %s302, %s304
      %p311 = scmp.eq.s32.totalorder %s37, 1
      %p312 = por %p310, %p311
      %p313 = scmp.ne.s32.totalorder %s304, %s305
      %p314 = scmp.eq.s32.totalorder %s37, 0
      %p315 = por %p313, %p314
      %p316 = scmp.ne.s32.totalorder %s304, %s305
      %p317 = scmp.eq.s32.totalorder %s38, 1
      %p318 = por %p316, %p317
      %p320 = scmp.ne.s32.totalorder %s305, %s319
      %p321 = scmp.eq.s32.totalorder %s38, 0
      %p322 = por %p320, %p321
      %s324 = sadd.s32 %s323, 1
      %p327 = scmp.eq.s32.totalorder %s32, 1
      %p328 = scmp.ne.s32.totalorder %s323, %s325
      %p329 = scmp.eq.s32.totalorder %s32, 0
      %p330 = por %p328, %p329
      %p331 = scmp.ne.s32.totalorder %s323, %s325
      %p332 = scmp.eq.s32.totalorder %s37, 1
      %p333 = por %p331, %p332
      %p334 = scmp.ne.s32.totalorder %s325, %s326
      %p335 = scmp.eq.s32.totalorder %s37, 0
      %p336 = por %p334, %p335
      %p337 = scmp.ne.s32.totalorder %s325, %s326
      %p338 = scmp.eq.s32.totalorder %s38, 1
      %p339 = por %p337, %p338
      %p341 = scmp.ne.s32.totalorder %s326, %s340
      %p342 = scmp.eq.s32.totalorder %s38, 0
      %p343 = por %p341, %p342
      %s345 = sadd.s32 %s344, 1
      %p348 = scmp.eq.s32.totalorder %s32, 1
      %p349 = scmp.ne.s32.totalorder %s344, %s346
      %p350 = scmp.eq.s32.totalorder %s32, 0
      %p351 = por %p349, %p350
      %p352 = scmp.ne.s32.totalorder %s344, %s346
      %p353 = scmp.eq.s32.totalorder %s37, 1
      %p354 = por %p352, %p353
      %p355 = scmp.ne.s32.totalorder %s346, %s347
      %p356 = scmp.eq.s32.totalorder %s37, 0
      %p357 = por %p355, %p356
      %p358 = scmp.ne.s32.totalorder %s346, %s347
      %p359 = scmp.eq.s32.totalorder %s38, 1
      %p360 = por %p358, %p359
      %p362 = scmp.ne.s32.totalorder %s347, %s361
      %p363 = scmp.eq.s32.totalorder %s38, 0
      %p364 = por %p362, %p363
      %s366 = sadd.s32 %s365, 1
      %p369 = scmp.eq.s32.totalorder %s32, 1
      %p370 = scmp.ne.s32.totalorder %s365, %s367
      %p371 = scmp.eq.s32.totalorder %s32, 0
      %p372 = por %p370, %p371
      %p373 = scmp.ne.s32.totalorder %s365, %s367
      %p374 = scmp.eq.s32.totalorder %s37, 1
      %p375 = por %p373, %p374
      %p376 = scmp.ne.s32.totalorder %s367, %s368
      %p377 = scmp.eq.s32.totalorder %s37, 0
      %p378 = por %p376, %p377
      %p379 = scmp.ne.s32.totalorder %s367, %s368
      %p380 = scmp.eq.s32.totalorder %s38, 1
      %p381 = por %p379, %p380
      %p383 = scmp.ne.s32.totalorder %s368, %s382
      %p384 = scmp.eq.s32.totalorder %s38, 0
      %p385 = por %p383, %p384
      %s387 = sadd.s32 %s386, 1
      %p390 = scmp.eq.s32.totalorder %s32, 1
      %p391 = scmp.ne.s32.totalorder %s386, %s388
      %p392 = scmp.eq.s32.totalorder %s32, 0
      %p393 = por %p391, %p392
      %p394 = scmp.ne.s32.totalorder %s386, %s388
      %p395 = scmp.eq.s32.totalorder %s37, 1
      %p396 = por %p394, %p395
      %p397 = scmp.ne.s32.totalorder %s388, %s389
      %p398 = scmp.eq.s32.totalorder %s37, 0
      %p399 = por %p397, %p398
      %p400 = scmp.ne.s32.totalorder %s388, %s389
      %p401 = scmp.eq.s32.totalorder %s38, 1
      %p402 = por %p400, %p401
      %p404 = scmp.ne.s32.totalorder %s389, %s403
      %p405 = scmp.eq.s32.totalorder %s38, 0
      %p406 = por %p404, %p405
      %s407 = ssub.s32 %s32, %s39
      %p408 = scmp.eq.s32.totalorder %s407, 0
      %s410 = sadd.s32 %s409, 1
      %s411 = scalar_select %p408, %s409, %s410
      %p414 = pneg %p408
      %p415 = scmp.eq.s32.totalorder %s32, 1
      %p416 = por %p414, %p415
      %p417 = scmp.ne.s32.totalorder %s409, %s412
      %p418 = scmp.eq.s32.totalorder %s32, 0
      %p419 = por %p417, %p418
      %p420 = scmp.ne.s32.totalorder %s409, %s412
      %p421 = scmp.eq.s32.totalorder %s37, 1
      %p422 = por %p420, %p421
      %p423 = scmp.ne.s32.totalorder %s412, %s413
      %p424 = scmp.eq.s32.totalorder %s37, 0
      %p425 = por %p423, %p424
      %p426 = scmp.ne.s32.totalorder %s412, %s413
      %p427 = scmp.eq.s32.totalorder %s38, 1
      %p428 = por %p426, %p427
      %p430 = scmp.ne.s32.totalorder %s413, %s429
      %p431 = scmp.eq.s32.totalorder %s38, 0
      %p432 = por %p430, %p431
      %p433 = scmp.le.s32.totalorder 1, %s32
      %p434 = scmp.lt.s32.totalorder %s32, 3
      %p435 = pnand %p433, %p434
      %p436 = pneg %p435
      // Predicated region
      $region9: #{tpu_custom_call.1} parent=5 // pred_check
        _
      $region10: #{tpu_custom_call.1} parent=5 // pred_check_branch
        %438 = sbr.rel (%p435) target = $region12
      $region11: #{tpu_custom_call.1} parent=5 // pred_region
        %s439 = ssub.s32 %s32, 1
        // Predicated region
        $region13: #{tpu_custom_call.1} parent=11 // pred_check
          %p440 = pneg %p105
        $region14: #{tpu_custom_call.1} parent=11 // pred_check_branch
          %442 = sbr.rel (%p440) target = $region16
        $region15: #{tpu_custom_call.1} parent=11 // pred_region
          _
        $region16: #{tpu_custom_call.1} parent=11 // pred_fallthru
          _
        // Predicated region
        $region17: #{tpu_custom_call.1} parent=11 // pred_check
          %p443 = pneg %p126
        $region18: #{tpu_custom_call.1} parent=11 // pred_check_branch
          %445 = sbr.rel (%p443) target = $region20
        $region19: #{tpu_custom_call.1} parent=11 // pred_region
          _
        $region20: #{tpu_custom_call.1} parent=11 // pred_fallthru
          _
        // Predicated region
        $region21: #{tpu_custom_call.1} parent=11 // pred_check
          %p446 = pneg %p147
        $region22: #{tpu_custom_call.1} parent=11 // pred_check_branch
          %448 = sbr.rel (%p446) target = $region24
        $region23: #{tpu_custom_call.1} parent=11 // pred_region
          _
        $region24: #{tpu_custom_call.1} parent=11 // pred_fallthru
          _
        // Predicated region
        $region25: #{tpu_custom_call.1} parent=11 // pred_check
          %p449 = pneg %p168
        $region26: #{tpu_custom_call.1} parent=11 // pred_check_branch
          %451 = sbr.rel (%p449) target = $region28
        $region27: #{tpu_custom_call.1} parent=11 // pred_region
          _
        $region28: #{tpu_custom_call.1} parent=11 // pred_fallthru
          _
        // Predicated region
        $region29: #{tpu_custom_call.1} parent=11 // pred_check
          %p452 = pneg %p189
        $region30: #{tpu_custom_call.1} parent=11 // pred_check_branch
          %454 = sbr.rel (%p452) target = $region32
        $region31: #{tpu_custom_call.1} parent=11 // pred_region
          _
        $region32: #{tpu_custom_call.1} parent=11 // pred_fallthru
          _
        // Predicated region
        $region33: #{tpu_custom_call.1} parent=11 // pred_check
          %p455 = pneg %p210
        $region34: #{tpu_custom_call.1} parent=11 // pred_check_branch
          %457 = sbr.rel (%p455) target = $region36
        $region35: #{tpu_custom_call.1} parent=11 // pred_region
          _
        $region36: #{tpu_custom_call.1} parent=11 // pred_fallthru
          _
        // Predicated region
        $region37: #{tpu_custom_call.1} parent=11 // pred_check
          %p458 = pneg %p231
        $region38: #{tpu_custom_call.1} parent=11 // pred_check_branch
          %460 = sbr.rel (%p458) target = $region40
        $region39: #{tpu_custom_call.1} parent=11 // pred_region
          _
        $region40: #{tpu_custom_call.1} parent=11 // pred_fallthru
          _
        // Predicated region
        $region41: #{tpu_custom_call.1} parent=11 // pred_check
          %p461 = pneg %p252
        $region42: #{tpu_custom_call.1} parent=11 // pred_check_branch
          %463 = sbr.rel (%p461) target = $region44
        $region43: #{tpu_custom_call.1} parent=11 // pred_region
          _
        $region44: #{tpu_custom_call.1} parent=11 // pred_fallthru
          _
        // Predicated region
        $region45: #{tpu_custom_call.1} parent=11 // pred_check
          %p464 = pneg %p273
        $region46: #{tpu_custom_call.1} parent=11 // pred_check_branch
          %466 = sbr.rel (%p464) target = $region48
        $region47: #{tpu_custom_call.1} parent=11 // pred_region
          _
        $region48: #{tpu_custom_call.1} parent=11 // pred_fallthru
          _
        // Predicated region
        $region49: #{tpu_custom_call.1} parent=11 // pred_check
          %p467 = pneg %p294
        $region50: #{tpu_custom_call.1} parent=11 // pred_check_branch
          %469 = sbr.rel (%p467) target = $region52
        $region51: #{tpu_custom_call.1} parent=11 // pred_region
          _
        $region52: #{tpu_custom_call.1} parent=11 // pred_fallthru
          _
        // Predicated region
        $region53: #{tpu_custom_call.1} parent=11 // pred_check
          %p470 = pneg %p315
        $region54: #{tpu_custom_call.1} parent=11 // pred_check_branch
          %472 = sbr.rel (%p470) target = $region56
        $region55: #{tpu_custom_call.1} parent=11 // pred_region
          _
        $region56: #{tpu_custom_call.1} parent=11 // pred_fallthru
          _
        // Predicated region
        $region57: #{tpu_custom_call.1} parent=11 // pred_check
          %p473 = pneg %p336
        $region58: #{tpu_custom_call.1} parent=11 // pred_check_branch
          %475 = sbr.rel (%p473) target = $region60
        $region59: #{tpu_custom_call.1} parent=11 // pred_region
          _
        $region60: #{tpu_custom_call.1} parent=11 // pred_fallthru
          _
        // Predicated region
        $region61: #{tpu_custom_call.1} parent=11 // pred_check
          %p476 = pneg %p357
        $region62: #{tpu_custom_call.1} parent=11 // pred_check_branch
          %478 = sbr.rel (%p476) target = $region64
        $region63: #{tpu_custom_call.1} parent=11 // pred_region
          _
        $region64: #{tpu_custom_call.1} parent=11 // pred_fallthru
          _
        // Predicated region
        $region65: #{tpu_custom_call.1} parent=11 // pred_check
          %p479 = pneg %p378
        $region66: #{tpu_custom_call.1} parent=11 // pred_check_branch
          %481 = sbr.rel (%p479) target = $region68
        $region67: #{tpu_custom_call.1} parent=11 // pred_region
          _
        $region68: #{tpu_custom_call.1} parent=11 // pred_fallthru
          _
        // Predicated region
        $region69: #{tpu_custom_call.1} parent=11 // pred_check
          %p482 = pneg %p399
        $region70: #{tpu_custom_call.1} parent=11 // pred_check_branch
          %484 = sbr.rel (%p482) target = $region72
        $region71: #{tpu_custom_call.1} parent=11 // pred_region
          _
        $region72: #{tpu_custom_call.1} parent=11 // pred_fallthru
          _
      $region12: #{tpu_custom_call.1} parent=5 // pred_fallthru
        _
      %p485 = scmp.lt.s32.totalorder %s32, 2
      // Predicated region
      $region73: #{tpu_custom_call.1} parent=5 // pred_check
        %p486 = pneg %p485
      $region74: #{tpu_custom_call.1} parent=5 // pred_check_branch
        %488 = sbr.rel (%p486) target = $region76
      $region75: #{tpu_custom_call.1} parent=5 // pred_region
        // Predicated region
        $region77: #{tpu_custom_call.1} parent=75 // pred_check
          %p489 = pneg %p52
        $region78: #{tpu_custom_call.1} parent=75 // pred_check_branch
          %491 = sbr.rel (%p489) target = $region80
        $region79: #{tpu_custom_call.1} parent=75 // pred_region
          %s492 = sand.u32 %s42, 1
          %s493 = scalar_lea.sflag [#allocation3], %s492
          %s494 = sand.u32 %s42, 1
          %s495 = smul.addr %s494, 8
          %s496 = scalar_lea.vmem [#allocation2], %s495
          %s498 = ssub.s32 128, 128
          %499 = vsyncadd %s493, %s498
          %s500 = smul.addr %s32, 128
          %s501 = scalar_lea.hbm %s0, %s500
          %s503 = sshll.u32 %s496, 4
          %s504 = int_to_ptr.vmem [resolvable:$true] %s503
          %506 = dma.hbm_to_vmem [thread:$0]  %s501, 128, %s504, %s493
        $region80: #{tpu_custom_call.1} parent=75 // pred_fallthru
          _
        // Predicated region
        $region81: #{tpu_custom_call.1} parent=75 // pred_check
          %p507 = pneg %p78
        $region82: #{tpu_custom_call.1} parent=75 // pred_check_branch
          %509 = sbr.rel (%p507) target = $region84
        $region83: #{tpu_custom_call.1} parent=75 // pred_region
          %s510 = sand.u32 %s68, 1
          %s511 = scalar_lea.sflag [#allocation6], %s510
          %s512 = sand.u32 %s68, 1
          %s513 = smul.addr %s512, 8
          %s514 = scalar_lea.vmem [#allocation5], %s513
          %s516 = ssub.s32 128, 128
          %517 = vsyncadd %s511, %s516
          %s518 = smul.addr %s32, 128
          %s519 = scalar_lea.hbm %s1, %s518
          %s521 = sshll.u32 %s514, 4
          %s522 = int_to_ptr.vmem [resolvable:$true] %s521
          %524 = dma.hbm_to_vmem [thread:$0]  %s519, 128, %s522, %s511
        $region84: #{tpu_custom_call.1} parent=75 // pred_fallthru
          _
      $region76: #{tpu_custom_call.1} parent=5 // pred_fallthru
        _
      %p525 = scmp.le.s32.totalorder 1, %s32
      %p526 = scmp.lt.s32.totalorder %s32, 3
      %p527 = pnand %p525, %p526
      %p528 = pneg %p527
      // Predicated region
      $region85: #{tpu_custom_call.1} parent=5 // pred_check
        _
      $region86: #{tpu_custom_call.1} parent=5 // pred_check_branch
        %530 = sbr.rel (%p527) target = $region88
      $region87: #{tpu_custom_call.1} parent=5 // pred_region
        %s531 = ssub.s32 %s32, 1
        %s532 = sand.u32 %s45, 1
        %s533 = scalar_lea.sflag [#allocation3], %s532
        %s534 = sand.u32 %s45, 1
        %s535 = smul.addr %s534, 8
        %s536 = scalar_lea.vmem [#allocation2], %s535
        // Predicated region
        $region89: #{tpu_custom_call.1} parent=87 // pred_check
          %p537 = pneg %p58
        $region90: #{tpu_custom_call.1} parent=87 // pred_check_branch
          %539 = sbr.rel (%p537) target = $region92
        $region91: #{tpu_custom_call.1} parent=87 // pred_region
          %540 = dma.done %s533, 128
        $region92: #{tpu_custom_call.1} parent=87 // pred_fallthru
          _
        %s541 = sand.u32 %s71, 1
        %s542 = scalar_lea.sflag [#allocation6], %s541
        %s543 = sand.u32 %s71, 1
        %s544 = smul.addr %s543, 8
        %s545 = scalar_lea.vmem [#allocation5], %s544
        // Predicated region
        $region93: #{tpu_custom_call.1} parent=87 // pred_check
          %p546 = pneg %p84
        $region94: #{tpu_custom_call.1} parent=87 // pred_check_branch
          %548 = sbr.rel (%p546) target = $region96
        $region95: #{tpu_custom_call.1} parent=87 // pred_region
          %549 = dma.done %s542, 128
        $region96: #{tpu_custom_call.1} parent=87 // pred_fallthru
          _
        %s550 = sand.u32 %s45, 1
        %s551 = scalar_lea.sflag [#allocation3], %s550
        %s552 = sand.u32 %s45, 1
        %s553 = smul.addr %s552, 8
        %s554 = scalar_lea.vmem [#allocation2], %s553
        %p555 = pneg %p58
        %p556 = pneg %p55
        %s557 = sand.u32 %s71, 1
        %s558 = scalar_lea.sflag [#allocation6], %s557
        %s559 = sand.u32 %s71, 1
        %s560 = smul.addr %s559, 8
        %s561 = scalar_lea.vmem [#allocation5], %s560
        %p562 = pneg %p84
        %p563 = pneg %p81
        %p564 = pneg %p105
        %p565 = pneg %p102
        %p566 = pneg %p126
        %p567 = pneg %p123
        %p568 = pneg %p147
        %p569 = pneg %p144
        %p570 = pneg %p168
        %p571 = pneg %p165
        %p572 = pneg %p189
        %p573 = pneg %p186
        %p574 = pneg %p210
        %p575 = pneg %p207
        %p576 = pneg %p231
        %p577 = pneg %p228
        %p578 = pneg %p252
        %p579 = pneg %p249
        %p580 = pneg %p273
        %p581 = pneg %p270
        %p582 = pneg %p294
        %p583 = pneg %p291
        %p584 = pneg %p315
        %p585 = pneg %p312
        %p586 = pneg %p336
        %p587 = pneg %p333
        %p588 = pneg %p357
        %p589 = pneg %p354
        %p590 = pneg %p378
        %p591 = pneg %p375
        %p592 = pneg %p399
        %p593 = pneg %p396
        %p594 = pneg %p425
        %p595 = pneg %p422
        %s596 = sand.u32 %s412, 1
        %s597 = scalar_lea.sflag [#allocation4], %s596
        %s598 = sand.u32 %s412, 1
        %s599 = smul.addr %s598, 8
        %s600 = scalar_lea.vmem [#allocation7], %s599
        %v601 = vld [vmem:[%s536] sm:$0xff]
        %v602 = vld [vmem:[%s545] sm:$0xff]
        %v603 = vld [vmem:[%s2] sm:$0xff]
        %v604 = vld [vmem:[%s2 + $0x8] sm:$0xff]
        %v605 = vld [vmem:[%s2 + $0x10] sm:$0xff]
        %v606 = vld [vmem:[%s2 + $0x18] sm:$0xff]
        %v607 = vld [vmem:[%s3] sm:$0x1]
        %v609 = vlaneseq
        %v610 = vshrl.u32 %v609, 7
        %v611 = vsub.s32 0, %v610
        %v612 = vrot.slane %v607, %v611
        %vm614 = vcmask 261120
        %v616 = vsel %vm614, %v601, 0
        %618 = vmatprep.subr.mxu0 0.0
        %619 = vmatpush1.msra.mxu0 %v603
        %620 = vmatprep.subr.mxu0 0.0
        %621 = vmatpush1.msra.mxu0 %v604
        %622 = vmatprep.subr.mxu0 0.0
        %623 = vmatpush1.msra.mxu0 %v605
        %624 = vmatprep.subr.mxu0 0.0
        %625 = vmatpush1.msra.mxu0 %v606
        %626 = vmatprep.subr.mxu0 0.0
        %627 = vmatpush1.msra.mxu0 0.0
        %628 = vmatprep.subr.mxu0 0.0
        %629 = vmatpush1.msra.mxu0 0.0
        %630 = vmatprep.subr.mxu0 0.0
        %631 = vmatpush1.msra.mxu0 0.0
        %632 = vmatprep.subr.mxu0 0.0
        %633 = vmatpush1.msra.mxu0 0.0
        %634 = vmatprep.subr.mxu0 0.0
        %635 = vmatpush1.msra.mxu0 0.0
        %636 = vmatprep.subr.mxu0 0.0
        %637 = vmatpush1.msra.mxu0 0.0
        %638 = vmatprep.subr.mxu0 0.0
        %639 = vmatpush1.msra.mxu0 0.0
        %640 = vmatprep.subr.mxu0 0.0
        %641 = vmatpush1.msra.mxu0 0.0
        %642 = vmatprep.subr.mxu0 0.0
        %643 = vmatpush1.msra.mxu0 0.0
        %644 = vmatprep.subr.mxu0 0.0
        %645 = vmatpush1.msra.mxu0 0.0
        %646 = vmatprep.subr.mxu0 0.0
        %647 = vmatpush1.msra.mxu0 0.0
        %648 = vmatprep.subr.mxu0 0.0
        %649 = vmatpush1.msra.mxu0 0.0
        %650 = vmatprep.subr.mxu0 0.0
        %651 = vmatpush1.msra.mxu0 0.0
        %652 = vmatprep.subr.mxu0 0.0
        %653 = vmatpush1.msra.mxu0 0.0
        %654 = vmatprep.subr.mxu0 0.0
        %655 = vmatpush1.msra.mxu0 0.0
        %656 = vmatprep.subr.mxu0 0.0
        %657 = vmatpush1.msra.mxu0 0.0
        %658 = vmatprep.subr.mxu0 0.0
        %659 = vmatpush1.msra.mxu0 0.0
        %660 = vmatprep.subr.mxu0 0.0
        %661 = vmatpush1.msra.mxu0 0.0
        %662 = vmatprep.subr.mxu0 0.0
        %663 = vmatpush1.msra.mxu0 0.0
        %664 = vmatprep.subr.mxu0 0.0
        %665 = vmatpush1.msra.mxu0 0.0
        %666 = vmatprep.subr.mxu0 0.0
        %667 = vmatpush1.msra.mxu0 0.0
        %668 = vmatprep.subr.mxu0 0.0
        %669 = vmatpush1.msra.mxu0 0.0
        %670 = vmatprep.subr.mxu0 0.0
        %671 = vmatpush1.msra.mxu0 0.0
        %672 = vmatprep.subr.mxu0 0.0
        %673 = vmatpush1.msra.mxu0 0.0
        %674 = vmatprep.subr.mxu0 0.0
        %675 = vmatpush1.msra.mxu0 0.0
        %676 = vmatprep.subr.mxu0 0.0
        %677 = vmatpush1.msra.mxu0 0.0
        %678 = vmatprep.subr.mxu0 0.0
        %679 = vmatpush1.msra.mxu0 0.0
        %680 = vmatprep.subr.mxu0 0.0
        %681 = vmatpush1.msra.mxu0 0.0
        %682 = vmatprep.mubr.f32.mxu0 0.0
        %683 = vmatmul.mubr.f32.gmra.mrb[0].mxu0 %v616
        %v684 = vpop.f32.mrb[0].mxu0
        %v685 = vadd.f32 %v612, %v684
        %v686 = vpop.f32.mrb[0].mxu0
        %687 = vdwg.mxu0
        %689 = vrot.lane.b32.xlu0 %v685, 96
        %v690 = vpop.permute.xlu0 %689
        %vm691 = vcmask 64512
        %v692 = vsel %vm691, %v685, 0
        %v694 = vsel %vm691, %v690, 0
        %696 = vmatprep.subr.mxu0 0.0
        %697 = vmatpush1.xpose.msra.mxu0 %v694
        %698 = vmatprep.subr.mxu0 0.0
        %699 = vmatpush1.xpose.msra.mxu0 0.0
        %700 = vmatprep.subr.mxu0 0.0
        %701 = vmatpush1.xpose.msra.mxu0 0.0
        %702 = vmatprep.subr.mxu0 0.0
        %703 = vmatpush1.xpose.msra.mxu0 0.0
        %704 = vmatprep.subr.mxu0 0.0
        %705 = vmatpush1.xpose.msra.mxu0 0.0
        %706 = vmatprep.subr.mxu0 0.0
        %707 = vmatpush1.xpose.msra.mxu0 0.0
        %708 = vmatprep.subr.mxu0 0.0
        %709 = vmatpush1.xpose.msra.mxu0 0.0
        %710 = vmatprep.subr.mxu0 0.0
        %711 = vmatpush1.xpose.msra.mxu0 0.0
        %712 = vmatprep.subr.mxu0 0.0
        %713 = vmatpush1.xpose.msra.mxu0 0.0
        %714 = vmatprep.subr.mxu0 0.0
        %715 = vmatpush1.xpose.msra.mxu0 0.0
        %716 = vmatprep.subr.mxu0 0.0
        %717 = vmatpush1.xpose.msra.mxu0 0.0
        %718 = vmatprep.subr.mxu0 0.0
        %719 = vmatpush1.xpose.msra.mxu0 0.0
        %720 = vmatprep.subr.mxu0 0.0
        %721 = vmatpush1.xpose.msra.mxu0 0.0
        %722 = vmatprep.subr.mxu0 0.0
        %723 = vmatpush1.xpose.msra.mxu0 0.0
        %724 = vmatprep.subr.mxu0 0.0
        %725 = vmatpush1.xpose.msra.mxu0 0.0
        %726 = vmatprep.subr.mxu0 0.0
        %727 = vmatpush1.xpose.msra.mxu0 0.0
        %728 = vmatprep.subr.mxu0 0.0
        %729 = vmatpush1.xpose.msra.mxu0 0.0
        %730 = vmatprep.subr.mxu0 0.0
        %731 = vmatpush1.xpose.msra.mxu0 0.0
        %732 = vmatprep.subr.mxu0 0.0
        %733 = vmatpush1.xpose.msra.mxu0 0.0
        %734 = vmatprep.subr.mxu0 0.0
        %735 = vmatpush1.xpose.msra.mxu0 0.0
        %736 = vmatprep.subr.mxu0 0.0
        %737 = vmatpush1.xpose.msra.mxu0 0.0
        %738 = vmatprep.subr.mxu0 0.0
        %739 = vmatpush1.xpose.msra.mxu0 0.0
        %740 = vmatprep.subr.mxu0 0.0
        %741 = vmatpush1.xpose.msra.mxu0 0.0
        %742 = vmatprep.subr.mxu0 0.0
        %743 = vmatpush1.xpose.msra.mxu0 0.0
        %744 = vmatprep.subr.mxu0 0.0
        %745 = vmatpush1.xpose.msra.mxu0 0.0
        %746 = vmatprep.subr.mxu0 0.0
        %747 = vmatpush1.xpose.msra.mxu0 0.0
        %748 = vmatprep.subr.mxu0 0.0
        %749 = vmatpush1.xpose.msra.mxu0 0.0
        %750 = vmatprep.subr.mxu0 0.0
        %751 = vmatpush1.xpose.msra.mxu0 0.0
        %752 = vmatprep.subr.mxu0 0.0
        %753 = vmatpush1.xpose.msra.mxu0 0.0
        %754 = vmatprep.subr.mxu0 0.0
        %755 = vmatpush1.xpose.msra.mxu0 0.0
        %756 = vmatprep.subr.mxu0 0.0
        %757 = vmatpush1.xpose.msra.mxu0 0.0
        %758 = vmatprep.subr.mxu0 0.0
        %759 = vmatpush1.xpose.msra.mxu0 0.0
        %760 = vmatprep.mubr.f32.mxu0 0.0
        %761 = vmatmul.mubr.f32.gmra.mrb[0].mxu0 %v692
        %v762 = vpop.f32.mrb[0].mxu0
        %v763 = vadd.f32 0.0, %v762
        %v764 = vpop.f32.mrb[0].mxu0
        %765 = vdwg.mxu0
        %v766 = vsel %vm691, %v763, -inf
        %767 = vmax.xlane.f32.xlu0 %v766
        %v768 = vpop.xlane.xlu0 %767
        %v769 = vsub.f32 %v763, %v768
        %v770 = vmul.f32 %v769, 1.442695
        %v771 = vpow.pop %v770
        %v772 = vsel %vm691, %v771, 0.0
        %773 = vadd.xlane.f32.xlu0 %v772
        %v774 = vpop.xlane.xlu0 %773
        %v775 = vrcp.pop %v774
        %v776 = vmul.f32 %v771, %v775
        %777 = vrot.lane.b32.xlu0 %v685, 64
        %v778 = vpop.permute.xlu0 %777
        %v781 = vsel %vm691, %v776, 0
        %783 = vmatprep.subr.mxu0 0.0
        %784 = vmatpush1.msra.mxu0 %v778
        %785 = vmatprep.subr.mxu0 0.0
        %786 = vmatpush1.msra.mxu0 0.0
        %787 = vmatprep.subr.mxu0 0.0
        %788 = vmatpush1.msra.mxu0 0.0
        %789 = vmatprep.subr.mxu0 0.0
        %790 = vmatpush1.msra.mxu0 0.0
        %791 = vmatprep.subr.mxu0 0.0
        %792 = vmatpush1.msra.mxu0 0.0
        %793 = vmatprep.subr.mxu0 0.0
        %794 = vmatpush1.msra.mxu0 0.0
        %795 = vmatprep.subr.mxu0 0.0
        %796 = vmatpush1.msra.mxu0 0.0
        %797 = vmatprep.subr.mxu0 0.0
        %798 = vmatpush1.msra.mxu0 0.0
        %799 = vmatprep.subr.mxu0 0.0
        %800 = vmatpush1.msra.mxu0 0.0
        %801 = vmatprep.subr.mxu0 0.0
        %802 = vmatpush1.msra.mxu0 0.0
        %803 = vmatprep.subr.mxu0 0.0
        %804 = vmatpush1.msra.mxu0 0.0
        %805 = vmatprep.subr.mxu0 0.0
        %806 = vmatpush1.msra.mxu0 0.0
        %807 = vmatprep.subr.mxu0 0.0
        %808 = vmatpush1.msra.mxu0 0.0
        %809 = vmatprep.subr.mxu0 0.0
        %810 = vmatpush1.msra.mxu0 0.0
        %811 = vmatprep.subr.mxu0 0.0
        %812 = vmatpush1.msra.mxu0 0.0
        %813 = vmatprep.subr.mxu0 0.0
        %814 = vmatpush1.msra.mxu0 0.0
        %815 = vmatprep.subr.mxu0 0.0
        %816 = vmatpush1.msra.mxu0 0.0
        %817 = vmatprep.subr.mxu0 0.0
        %818 = vmatpush1.msra.mxu0 0.0
        %819 = vmatprep.subr.mxu0 0.0
        %820 = vmatpush1.msra.mxu0 0.0
        %821 = vmatprep.subr.mxu0 0.0
        %822 = vmatpush1.msra.mxu0 0.0
        %823 = vmatprep.subr.mxu0 0.0
        %824 = vmatpush1.msra.mxu0 0.0
        %825 = vmatprep.subr.mxu0 0.0
        %826 = vmatpush1.msra.mxu0 0.0
        %827 = vmatprep.subr.mxu0 0.0
        %828 = vmatpush1.msra.mxu0 0.0
        %829 = vmatprep.subr.mxu0 0.0
        %830 = vmatpush1.msra.mxu0 0.0
        %831 = vmatprep.subr.mxu0 0.0
        %832 = vmatpush1.msra.mxu0 0.0
        %833 = vmatprep.subr.mxu0 0.0
        %834 = vmatpush1.msra.mxu0 0.0
        %835 = vmatprep.subr.mxu0 0.0
        %836 = vmatpush1.msra.mxu0 0.0
        %837 = vmatprep.subr.mxu0 0.0
        %838 = vmatpush1.msra.mxu0 0.0
        %839 = vmatprep.subr.mxu0 0.0
        %840 = vmatpush1.msra.mxu0 0.0
        %841 = vmatprep.subr.mxu0 0.0
        %842 = vmatpush1.msra.mxu0 0.0
        %843 = vmatprep.subr.mxu0 0.0
        %844 = vmatpush1.msra.mxu0 0.0
        %845 = vmatprep.subr.mxu0 0.0
        %846 = vmatpush1.msra.mxu0 0.0
        %847 = vmatprep.mubr.f32.mxu0 0.0
        %848 = vmatmul.mubr.f32.gmra.mrb[0].mxu0 %v781
        %v849 = vpop.f32.mrb[0].mxu0
        %v850 = vadd.f32 0.0, %v849
        %v851 = vpop.f32.mrb[0].mxu0
        %852 = vdwg.mxu0
        %853 = vrot.lane.b32.xlu0 %v685, 120
        %v854 = vpop.permute.xlu0 %853
        %855 = vrot.lane.b32.xlu0 %v685, 88
        %v856 = vpop.permute.xlu0 %855
        %v857 = vsel %vm691, %v854, 0
        %v859 = vsel %vm691, %v856, 0
        %861 = vmatprep.subr.mxu0 0.0
        %862 = vmatpush1.xpose.msra.mxu0 %v859
        %863 = vmatprep.subr.mxu0 0.0
        %864 = vmatpush1.xpose.msra.mxu0 0.0
        %865 = vmatprep.subr.mxu0 0.0
        %866 = vmatpush1.xpose.msra.mxu0 0.0
        %867 = vmatprep.subr.mxu0 0.0
        %868 = vmatpush1.xpose.msra.mxu0 0.0
        %869 = vmatprep.subr.mxu0 0.0
        %870 = vmatpush1.xpose.msra.mxu0 0.0
        %871 = vmatprep.subr.mxu0 0.0
        %872 = vmatpush1.xpose.msra.mxu0 0.0
        %873 = vmatprep.subr.mxu0 0.0
        %874 = vmatpush1.xpose.msra.mxu0 0.0
        %875 = vmatprep.subr.mxu0 0.0
        %876 = vmatpush1.xpose.msra.mxu0 0.0
        %877 = vmatprep.subr.mxu0 0.0
        %878 = vmatpush1.xpose.msra.mxu0 0.0
        %879 = vmatprep.subr.mxu0 0.0
        %880 = vmatpush1.xpose.msra.mxu0 0.0
        %881 = vmatprep.subr.mxu0 0.0
        %882 = vmatpush1.xpose.msra.mxu0 0.0
        %883 = vmatprep.subr.mxu0 0.0
        %884 = vmatpush1.xpose.msra.mxu0 0.0
        %885 = vmatprep.subr.mxu0 0.0
        %886 = vmatpush1.xpose.msra.mxu0 0.0
        %887 = vmatprep.subr.mxu0 0.0
        %888 = vmatpush1.xpose.msra.mxu0 0.0
        %889 = vmatprep.subr.mxu0 0.0
        %890 = vmatpush1.xpose.msra.mxu0 0.0
        %891 = vmatprep.subr.mxu0 0.0
        %892 = vmatpush1.xpose.msra.mxu0 0.0
        %893 = vmatprep.subr.mxu0 0.0
        %894 = vmatpush1.xpose.msra.mxu0 0.0
        %895 = vmatprep.subr.mxu0 0.0
        %896 = vmatpush1.xpose.msra.mxu0 0.0
        %897 = vmatprep.subr.mxu0 0.0
        %898 = vmatpush1.xpose.msra.mxu0 0.0
        %899 = vmatprep.subr.mxu0 0.0
        %900 = vmatpush1.xpose.msra.mxu0 0.0
        %901 = vmatprep.subr.mxu0 0.0
        %902 = vmatpush1.xpose.msra.mxu0 0.0
        %903 = vmatprep.subr.mxu0 0.0
        %904 = vmatpush1.xpose.msra.mxu0 0.0
        %905 = vmatprep.subr.mxu0 0.0
        %906 = vmatpush1.xpose.msra.mxu0 0.0
        %907 = vmatprep.subr.mxu0 0.0
        %908 = vmatpush1.xpose.msra.mxu0 0.0
        %909 = vmatprep.subr.mxu0 0.0
        %910 = vmatpush1.xpose.msra.mxu0 0.0
        %911 = vmatprep.subr.mxu0 0.0
        %912 = vmatpush1.xpose.msra.mxu0 0.0
        %913 = vmatprep.subr.mxu0 0.0
        %914 = vmatpush1.xpose.msra.mxu0 0.0
        %915 = vmatprep.subr.mxu0 0.0
        %916 = vmatpush1.xpose.msra.mxu0 0.0
        %917 = vmatprep.subr.mxu0 0.0
        %918 = vmatpush1.xpose.msra.mxu0 0.0
        %919 = vmatprep.subr.mxu0 0.0
        %920 = vmatpush1.xpose.msra.mxu0 0.0
        %921 = vmatprep.subr.mxu0 0.0
        %922 = vmatpush1.xpose.msra.mxu0 0.0
        %923 = vmatprep.subr.mxu0 0.0
        %924 = vmatpush1.xpose.msra.mxu0 0.0
        %925 = vmatprep.mubr.f32.mxu0 0.0
        %926 = vmatmul.mubr.f32.gmra.mrb[0].mxu0 %v857
        %v927 = vpop.f32.mrb[0].mxu0
        %v928 = vadd.f32 0.0, %v927
        %v929 = vpop.f32.mrb[0].mxu0
        %930 = vdwg.mxu0
        %v931 = vsel %vm691, %v928, -inf
        %932 = vmax.xlane.f32.xlu0 %v931
        %v933 = vpop.xlane.xlu0 %932
        %v934 = vsub.f32 %v928, %v933
        %v935 = vmul.f32 %v934, 1.442695
        %v936 = vpow.pop %v935
        %v937 = vsel %vm691, %v936, 0.0
        %938 = vadd.xlane.f32.xlu0 %v937
        %v939 = vpop.xlane.xlu0 %938
        %v940 = vrcp.pop %v939
        %v941 = vmul.f32 %v936, %v940
        %942 = vrot.lane.b32.xlu0 %v685, 56
        %v943 = vpop.permute.xlu0 %942
        %v946 = vsel %vm691, %v941, 0
        %948 = vmatprep.subr.mxu0 0.0
        %949 = vmatpush1.msra.mxu0 %v943
        %950 = vmatprep.subr.mxu0 0.0
        %951 = vmatpush1.msra.mxu0 0.0
        %952 = vmatprep.subr.mxu0 0.0
        %953 = vmatpush1.msra.mxu0 0.0
        %954 = vmatprep.subr.mxu0 0.0
        %955 = vmatpush1.msra.mxu0 0.0
        %956 = vmatprep.subr.mxu0 0.0
        %957 = vmatpush1.msra.mxu0 0.0
        %958 = vmatprep.subr.mxu0 0.0
        %959 = vmatpush1.msra.mxu0 0.0
        %960 = vmatprep.subr.mxu0 0.0
        %961 = vmatpush1.msra.mxu0 0.0
        %962 = vmatprep.subr.mxu0 0.0
        %963 = vmatpush1.msra.mxu0 0.0
        %964 = vmatprep.subr.mxu0 0.0
        %965 = vmatpush1.msra.mxu0 0.0
        %966 = vmatprep.subr.mxu0 0.0
        %967 = vmatpush1.msra.mxu0 0.0
        %968 = vmatprep.subr.mxu0 0.0
        %969 = vmatpush1.msra.mxu0 0.0
        %970 = vmatprep.subr.mxu0 0.0
        %971 = vmatpush1.msra.mxu0 0.0
        %972 = vmatprep.subr.mxu0 0.0
        %973 = vmatpush1.msra.mxu0 0.0
        %974 = vmatprep.subr.mxu0 0.0
        %975 = vmatpush1.msra.mxu0 0.0
        %976 = vmatprep.subr.mxu0 0.0
        %977 = vmatpush1.msra.mxu0 0.0
        %978 = vmatprep.subr.mxu0 0.0
        %979 = vmatpush1.msra.mxu0 0.0
        %980 = vmatprep.subr.mxu0 0.0
        %981 = vmatpush1.msra.mxu0 0.0
        %982 = vmatprep.subr.mxu0 0.0
        %983 = vmatpush1.msra.mxu0 0.0
        %984 = vmatprep.subr.mxu0 0.0
        %985 = vmatpush1.msra.mxu0 0.0
        %986 = vmatprep.subr.mxu0 0.0
        %987 = vmatpush1.msra.mxu0 0.0
        %988 = vmatprep.subr.mxu0 0.0
        %989 = vmatpush1.msra.mxu0 0.0
        %990 = vmatprep.subr.mxu0 0.0
        %991 = vmatpush1.msra.mxu0 0.0
        %992 = vmatprep.subr.mxu0 0.0
        %993 = vmatpush1.msra.mxu0 0.0
        %994 = vmatprep.subr.mxu0 0.0
        %995 = vmatpush1.msra.mxu0 0.0
        %996 = vmatprep.subr.mxu0 0.0
        %997 = vmatpush1.msra.mxu0 0.0
        %998 = vmatprep.subr.mxu0 0.0
        %999 = vmatpush1.msra.mxu0 0.0
        %1000 = vmatprep.subr.mxu0 0.0
        %1001 = vmatpush1.msra.mxu0 0.0
        %1002 = vmatprep.subr.mxu0 0.0
        %1003 = vmatpush1.msra.mxu0 0.0
        %1004 = vmatprep.subr.mxu0 0.0
        %1005 = vmatpush1.msra.mxu0 0.0
        %1006 = vmatprep.subr.mxu0 0.0
        %1007 = vmatpush1.msra.mxu0 0.0
        %1008 = vmatprep.subr.mxu0 0.0
        %1009 = vmatpush1.msra.mxu0 0.0
        %1010 = vmatprep.subr.mxu0 0.0
        %1011 = vmatpush1.msra.mxu0 0.0
        %1012 = vmatprep.mubr.f32.mxu0 0.0
        %1013 = vmatmul.mubr.f32.gmra.mrb[0].mxu0 %v946
        %v1014 = vpop.f32.mrb[0].mxu0
        %v1015 = vadd.f32 0.0, %v1014
        %v1016 = vpop.f32.mrb[0].mxu0
        %1017 = vdwg.mxu0
        %1018 = vrot.lane.b32.xlu0 %v685, 112
        %v1019 = vpop.permute.xlu0 %1018
        %1020 = vrot.lane.b32.xlu0 %v685, 80
        %v1021 = vpop.permute.xlu0 %1020
        %v1022 = vsel %vm691, %v1019, 0
        %v1024 = vsel %vm691, %v1021, 0
        %1026 = vmatprep.subr.mxu0 0.0
        %1027 = vmatpush1.xpose.msra.mxu0 %v1024
        %1028 = vmatprep.subr.mxu0 0.0
        %1029 = vmatpush1.xpose.msra.mxu0 0.0
        %1030 = vmatprep.subr.mxu0 0.0
        %1031 = vmatpush1.xpose.msra.mxu0 0.0
        %1032 = vmatprep.subr.mxu0 0.0
        %1033 = vmatpush1.xpose.msra.mxu0 0.0
        %1034 = vmatprep.subr.mxu0 0.0
        %1035 = vmatpush1.xpose.msra.mxu0 0.0
        %1036 = vmatprep.subr.mxu0 0.0
        %1037 = vmatpush1.xpose.msra.mxu0 0.0
        %1038 = vmatprep.subr.mxu0 0.0
        %1039 = vmatpush1.xpose.msra.mxu0 0.0
        %1040 = vmatprep.subr.mxu0 0.0
        %1041 = vmatpush1.xpose.msra.mxu0 0.0
        %1042 = vmatprep.subr.mxu0 0.0
        %1043 = vmatpush1.xpose.msra.mxu0 0.0
        %1044 = vmatprep.subr.mxu0 0.0
        %1045 = vmatpush1.xpose.msra.mxu0 0.0
        %1046 = vmatprep.subr.mxu0 0.0
        %1047 = vmatpush1.xpose.msra.mxu0 0.0
        %1048 = vmatprep.subr.mxu0 0.0
        %1049 = vmatpush1.xpose.msra.mxu0 0.0
        %1050 = vmatprep.subr.mxu0 0.0
        %1051 = vmatpush1.xpose.msra.mxu0 0.0
        %1052 = vmatprep.subr.mxu0 0.0
        %1053 = vmatpush1.xpose.msra.mxu0 0.0
        %1054 = vmatprep.subr.mxu0 0.0
        %1055 = vmatpush1.xpose.msra.mxu0 0.0
        %1056 = vmatprep.subr.mxu0 0.0
        %1057 = vmatpush1.xpose.msra.mxu0 0.0
        %1058 = vmatprep.subr.mxu0 0.0
        %1059 = vmatpush1.xpose.msra.mxu0 0.0
        %1060 = vmatprep.subr.mxu0 0.0
        %1061 = vmatpush1.xpose.msra.mxu0 0.0
        %1062 = vmatprep.subr.mxu0 0.0
        %1063 = vmatpush1.xpose.msra.mxu0 0.0
        %1064 = vmatprep.subr.mxu0 0.0
        %1065 = vmatpush1.xpose.msra.mxu0 0.0
        %1066 = vmatprep.subr.mxu0 0.0
        %1067 = vmatpush1.xpose.msra.mxu0 0.0
        %1068 = vmatprep.subr.mxu0 0.0
        %1069 = vmatpush1.xpose.msra.mxu0 0.0
        %1070 = vmatprep.subr.mxu0 0.0
        %1071 = vmatpush1.xpose.msra.mxu0 0.0
        %1072 = vmatprep.subr.mxu0 0.0
        %1073 = vmatpush1.xpose.msra.mxu0 0.0
        %1074 = vmatprep.subr.mxu0 0.0
        %1075 = vmatpush1.xpose.msra.mxu0 0.0
        %1076 = vmatprep.subr.mxu0 0.0
        %1077 = vmatpush1.xpose.msra.mxu0 0.0
        %1078 = vmatprep.subr.mxu0 0.0
        %1079 = vmatpush1.xpose.msra.mxu0 0.0
        %1080 = vmatprep.subr.mxu0 0.0
        %1081 = vmatpush1.xpose.msra.mxu0 0.0
        %1082 = vmatprep.subr.mxu0 0.0
        %1083 = vmatpush1.xpose.msra.mxu0 0.0
        %1084 = vmatprep.subr.mxu0 0.0
        %1085 = vmatpush1.xpose.msra.mxu0 0.0
        %1086 = vmatprep.subr.mxu0 0.0
        %1087 = vmatpush1.xpose.msra.mxu0 0.0
        %1088 = vmatprep.subr.mxu0 0.0
        %1089 = vmatpush1.xpose.msra.mxu0 0.0
        %1090 = vmatprep.mubr.f32.mxu0 0.0
        %1091 = vmatmul.mubr.f32.gmra.mrb[0].mxu0 %v1022
        %v1092 = vpop.f32.mrb[0].mxu0
        %v1093 = vadd.f32 0.0, %v1092
        %v1094 = vpop.f32.mrb[0].mxu0
        %1095 = vdwg.mxu0
        %v1096 = vsel %vm691, %v1093, -inf
        %1097 = vmax.xlane.f32.xlu0 %v1096
        %v1098 = vpop.xlane.xlu0 %1097
        %v1099 = vsub.f32 %v1093, %v1098
        %v1100 = vmul.f32 %v1099, 1.442695
        %v1101 = vpow.pop %v1100
        %v1102 = vsel %vm691, %v1101, 0.0
        %1103 = vadd.xlane.f32.xlu0 %v1102
        %v1104 = vpop.xlane.xlu0 %1103
        %v1105 = vrcp.pop %v1104
        %v1106 = vmul.f32 %v1101, %v1105
        %1107 = vrot.lane.b32.xlu0 %v685, 48
        %v1108 = vpop.permute.xlu0 %1107
        %v1111 = vsel %vm691, %v1106, 0
        %1113 = vmatprep.subr.mxu0 0.0
        %1114 = vmatpush1.msra.mxu0 %v1108
        %1115 = vmatprep.subr.mxu0 0.0
        %1116 = vmatpush1.msra.mxu0 0.0
        %1117 = vmatprep.subr.mxu0 0.0
        %1118 = vmatpush1.msra.mxu0 0.0
        %1119 = vmatprep.subr.mxu0 0.0
        %1120 = vmatpush1.msra.mxu0 0.0
        %1121 = vmatprep.subr.mxu0 0.0
        %1122 = vmatpush1.msra.mxu0 0.0
        %1123 = vmatprep.subr.mxu0 0.0
        %1124 = vmatpush1.msra.mxu0 0.0
        %1125 = vmatprep.subr.mxu0 0.0
        %1126 = vmatpush1.msra.mxu0 0.0
        %1127 = vmatprep.subr.mxu0 0.0
        %1128 = vmatpush1.msra.mxu0 0.0
        %1129 = vmatprep.subr.mxu0 0.0
        %1130 = vmatpush1.msra.mxu0 0.0
        %1131 = vmatprep.subr.mxu0 0.0
        %1132 = vmatpush1.msra.mxu0 0.0
        %1133 = vmatprep.subr.mxu0 0.0
        %1134 = vmatpush1.msra.mxu0 0.0
        %1135 = vmatprep.subr.mxu0 0.0
        %1136 = vmatpush1.msra.mxu0 0.0
        %1137 = vmatprep.subr.mxu0 0.0
        %1138 = vmatpush1.msra.mxu0 0.0
        %1139 = vmatprep.subr.mxu0 0.0
        %1140 = vmatpush1.msra.mxu0 0.0
        %1141 = vmatprep.subr.mxu0 0.0
        %1142 = vmatpush1.msra.mxu0 0.0
        %1143 = vmatprep.subr.mxu0 0.0
        %1144 = vmatpush1.msra.mxu0 0.0
        %1145 = vmatprep.subr.mxu0 0.0
        %1146 = vmatpush1.msra.mxu0 0.0
        %1147 = vmatprep.subr.mxu0 0.0
        %1148 = vmatpush1.msra.mxu0 0.0
        %1149 = vmatprep.subr.mxu0 0.0
        %1150 = vmatpush1.msra.mxu0 0.0
        %1151 = vmatprep.subr.mxu0 0.0
        %1152 = vmatpush1.msra.mxu0 0.0
        %1153 = vmatprep.subr.mxu0 0.0
        %1154 = vmatpush1.msra.mxu0 0.0
        %1155 = vmatprep.subr.mxu0 0.0
        %1156 = vmatpush1.msra.mxu0 0.0
        %1157 = vmatprep.subr.mxu0 0.0
        %1158 = vmatpush1.msra.mxu0 0.0
        %1159 = vmatprep.subr.mxu0 0.0
        %1160 = vmatpush1.msra.mxu0 0.0
        %1161 = vmatprep.subr.mxu0 0.0
        %1162 = vmatpush1.msra.mxu0 0.0
        %1163 = vmatprep.subr.mxu0 0.0
        %1164 = vmatpush1.msra.mxu0 0.0
        %1165 = vmatprep.subr.mxu0 0.0
        %1166 = vmatpush1.msra.mxu0 0.0
        %1167 = vmatprep.subr.mxu0 0.0
        %1168 = vmatpush1.msra.mxu0 0.0
        %1169 = vmatprep.subr.mxu0 0.0
        %1170 = vmatpush1.msra.mxu0 0.0
        %1171 = vmatprep.subr.mxu0 0.0
        %1172 = vmatpush1.msra.mxu0 0.0
        %1173 = vmatprep.subr.mxu0 0.0
        %1174 = vmatpush1.msra.mxu0 0.0
        %1175 = vmatprep.subr.mxu0 0.0
        %1176 = vmatpush1.msra.mxu0 0.0
        %1177 = vmatprep.mubr.f32.mxu0 0.0
        %1178 = vmatmul.mubr.f32.gmra.mrb[0].mxu0 %v1111
        %v1179 = vpop.f32.mrb[0].mxu0
        %v1180 = vadd.f32 0.0, %v1179
        %v1181 = vpop.f32.mrb[0].mxu0
        %1182 = vdwg.mxu0
        %1183 = vrot.lane.b32.xlu0 %v685, 104
        %v1184 = vpop.permute.xlu0 %1183
        %1185 = vrot.lane.b32.xlu0 %v685, 72
        %v1186 = vpop.permute.xlu0 %1185
        %v1187 = vsel %vm691, %v1184, 0
        %v1189 = vsel %vm691, %v1186, 0
        %1191 = vmatprep.subr.mxu0 0.0
        %1192 = vmatpush1.xpose.msra.mxu0 %v1189
        %1193 = vmatprep.subr.mxu0 0.0
        %1194 = vmatpush1.xpose.msra.mxu0 0.0
        %1195 = vmatprep.subr.mxu0 0.0
        %1196 = vmatpush1.xpose.msra.mxu0 0.0
        %1197 = vmatprep.subr.mxu0 0.0
        %1198 = vmatpush1.xpose.msra.mxu0 0.0
        %1199 = vmatprep.subr.mxu0 0.0
        %1200 = vmatpush1.xpose.msra.mxu0 0.0
        %1201 = vmatprep.subr.mxu0 0.0
        %1202 = vmatpush1.xpose.msra.mxu0 0.0
        %1203 = vmatprep.subr.mxu0 0.0
        %1204 = vmatpush1.xpose.msra.mxu0 0.0
        %1205 = vmatprep.subr.mxu0 0.0
        %1206 = vmatpush1.xpose.msra.mxu0 0.0
        %1207 = vmatprep.subr.mxu0 0.0
        %1208 = vmatpush1.xpose.msra.mxu0 0.0
        %1209 = vmatprep.subr.mxu0 0.0
        %1210 = vmatpush1.xpose.msra.mxu0 0.0
        %1211 = vmatprep.subr.mxu0 0.0
        %1212 = vmatpush1.xpose.msra.mxu0 0.0
        %1213 = vmatprep.subr.mxu0 0.0
        %1214 = vmatpush1.xpose.msra.mxu0 0.0
        %1215 = vmatprep.subr.mxu0 0.0
        %1216 = vmatpush1.xpose.msra.mxu0 0.0
        %1217 = vmatprep.subr.mxu0 0.0
        %1218 = vmatpush1.xpose.msra.mxu0 0.0
        %1219 = vmatprep.subr.mxu0 0.0
        %1220 = vmatpush1.xpose.msra.mxu0 0.0
        %1221 = vmatprep.subr.mxu0 0.0
        %1222 = vmatpush1.xpose.msra.mxu0 0.0
        %1223 = vmatprep.subr.mxu0 0.0
        %1224 = vmatpush1.xpose.msra.mxu0 0.0
        %1225 = vmatprep.subr.mxu0 0.0
        %1226 = vmatpush1.xpose.msra.mxu0 0.0
        %1227 = vmatprep.subr.mxu0 0.0
        %1228 = vmatpush1.xpose.msra.mxu0 0.0
        %1229 = vmatprep.subr.mxu0 0.0
        %1230 = vmatpush1.xpose.msra.mxu0 0.0
        %1231 = vmatprep.subr.mxu0 0.0
        %1232 = vmatpush1.xpose.msra.mxu0 0.0
        %1233 = vmatprep.subr.mxu0 0.0
        %1234 = vmatpush1.xpose.msra.mxu0 0.0
        %1235 = vmatprep.subr.mxu0 0.0
        %1236 = vmatpush1.xpose.msra.mxu0 0.0
        %1237 = vmatprep.subr.mxu0 0.0
        %1238 = vmatpush1.xpose.msra.mxu0 0.0
        %1239 = vmatprep.subr.mxu0 0.0
        %1240 = vmatpush1.xpose.msra.mxu0 0.0
        %1241 = vmatprep.subr.mxu0 0.0
        %1242 = vmatpush1.xpose.msra.mxu0 0.0
        %1243 = vmatprep.subr.mxu0 0.0
        %1244 = vmatpush1.xpose.msra.mxu0 0.0
        %1245 = vmatprep.subr.mxu0 0.0
        %1246 = vmatpush1.xpose.msra.mxu0 0.0
        %1247 = vmatprep.subr.mxu0 0.0
        %1248 = vmatpush1.xpose.msra.mxu0 0.0
        %1249 = vmatprep.subr.mxu0 0.0
        %1250 = vmatpush1.xpose.msra.mxu0 0.0
        %1251 = vmatprep.subr.mxu0 0.0
        %1252 = vmatpush1.xpose.msra.mxu0 0.0
        %1253 = vmatprep.subr.mxu0 0.0
        %1254 = vmatpush1.xpose.msra.mxu0 0.0
        %1255 = vmatprep.mubr.f32.mxu0 0.0
        %1256 = vmatmul.mubr.f32.gmra.mrb[0].mxu0 %v1187
        %v1257 = vpop.f32.mrb[0].mxu0
        %v1258 = vadd.f32 0.0, %v1257
        %v1259 = vpop.f32.mrb[0].mxu0
        %1260 = vdwg.mxu0
        %v1261 = vsel %vm691, %v1258, -inf
        %1262 = vmax.xlane.f32.xlu0 %v1261
        %v1263 = vpop.xlane.xlu0 %1262
        %v1264 = vsub.f32 %v1258, %v1263
        %v1265 = vmul.f32 %v1264, 1.442695
        %v1266 = vpow.pop %v1265
        %v1267 = vsel %vm691, %v1266, 0.0
        %1268 = vadd.xlane.f32.xlu0 %v1267
        %v1269 = vpop.xlane.xlu0 %1268
        %v1270 = vrcp.pop %v1269
        %v1271 = vmul.f32 %v1266, %v1270
        %1272 = vrot.lane.b32.xlu0 %v685, 40
        %v1273 = vpop.permute.xlu0 %1272
        %v1276 = vsel %vm691, %v1271, 0
        %1278 = vmatprep.subr.mxu0 0.0
        %1279 = vmatpush1.msra.mxu0 %v1273
        %1280 = vmatprep.subr.mxu0 0.0
        %1281 = vmatpush1.msra.mxu0 0.0
        %1282 = vmatprep.subr.mxu0 0.0
        %1283 = vmatpush1.msra.mxu0 0.0
        %1284 = vmatprep.subr.mxu0 0.0
        %1285 = vmatpush1.msra.mxu0 0.0
        %1286 = vmatprep.subr.mxu0 0.0
        %1287 = vmatpush1.msra.mxu0 0.0
        %1288 = vmatprep.subr.mxu0 0.0
        %1289 = vmatpush1.msra.mxu0 0.0
        %1290 = vmatprep.subr.mxu0 0.0
        %1291 = vmatpush1.msra.mxu0 0.0
        %1292 = vmatprep.subr.mxu0 0.0
        %1293 = vmatpush1.msra.mxu0 0.0
        %1294 = vmatprep.subr.mxu0 0.0
        %1295 = vmatpush1.msra.mxu0 0.0
        %1296 = vmatprep.subr.mxu0 0.0
        %1297 = vmatpush1.msra.mxu0 0.0
        %1298 = vmatprep.subr.mxu0 0.0
        %1299 = vmatpush1.msra.mxu0 0.0
        %1300 = vmatprep.subr.mxu0 0.0
        %1301 = vmatpush1.msra.mxu0 0.0
        %1302 = vmatprep.subr.mxu0 0.0
        %1303 = vmatpush1.msra.mxu0 0.0
        %1304 = vmatprep.subr.mxu0 0.0
        %1305 = vmatpush1.msra.mxu0 0.0
        %1306 = vmatprep.subr.mxu0 0.0
        %1307 = vmatpush1.msra.mxu0 0.0
        %1308 = vmatprep.subr.mxu0 0.0
        %1309 = vmatpush1.msra.mxu0 0.0
        %1310 = vmatprep.subr.mxu0 0.0
        %1311 = vmatpush1.msra.mxu0 0.0
        %1312 = vmatprep.subr.mxu0 0.0
        %1313 = vmatpush1.msra.mxu0 0.0
        %1314 = vmatprep.subr.mxu0 0.0
        %1315 = vmatpush1.msra.mxu0 0.0
        %1316 = vmatprep.subr.mxu0 0.0
        %1317 = vmatpush1.msra.mxu0 0.0
        %1318 = vmatprep.subr.mxu0 0.0
        %1319 = vmatpush1.msra.mxu0 0.0
        %1320 = vmatprep.subr.mxu0 0.0
        %1321 = vmatpush1.msra.mxu0 0.0
        %1322 = vmatprep.subr.mxu0 0.0
        %1323 = vmatpush1.msra.mxu0 0.0
        %1324 = vmatprep.subr.mxu0 0.0
        %1325 = vmatpush1.msra.mxu0 0.0
        %1326 = vmatprep.subr.mxu0 0.0
        %1327 = vmatpush1.msra.mxu0 0.0
        %1328 = vmatprep.subr.mxu0 0.0
        %1329 = vmatpush1.msra.mxu0 0.0
        %1330 = vmatprep.subr.mxu0 0.0
        %1331 = vmatpush1.msra.mxu0 0.0
        %1332 = vmatprep.subr.mxu0 0.0
        %1333 = vmatpush1.msra.mxu0 0.0
        %1334 = vmatprep.subr.mxu0 0.0
        %1335 = vmatpush1.msra.mxu0 0.0
        %1336 = vmatprep.subr.mxu0 0.0
        %1337 = vmatpush1.msra.mxu0 0.0
        %1338 = vmatprep.subr.mxu0 0.0
        %1339 = vmatpush1.msra.mxu0 0.0
        %1340 = vmatprep.subr.mxu0 0.0
        %1341 = vmatpush1.msra.mxu0 0.0
        %1342 = vmatprep.mubr.f32.mxu0 0.0
        %1343 = vmatmul.mubr.f32.gmra.mrb[0].mxu0 %v1276
        %v1344 = vpop.f32.mrb[0].mxu0
        %v1345 = vadd.f32 0.0, %v1344
        %v1346 = vpop.f32.mrb[0].mxu0
        %1347 = vdwg.mxu0
        %1349 = vrot.lane.b32.xlu0 %v1015, 8
        %v1350 = vpop.permute.xlu0 %1349
        %1353 = vrot.lane.b32.xlu0 %v1180, 16
        %v1354 = vpop.permute.xlu0 %1353
        %1357 = vrot.lane.b32.xlu0 %v1345, 24
        %v1358 = vpop.permute.xlu0 %1357
        %v1360 = vsel %vm691, %v850, %v1350
        %vm1361 = vcmask 130048
        %v1362 = vsel %vm1361, %v1360, %v1354
        %vm1363 = vcmask 195584
        %v1364 = vsel %vm1363, %v1362, %v1358
        %v1365 = vld [vmem:[%s4] sm:$0xff]
        %v1366 = vld [vmem:[%s4 + $0x8] sm:$0xff]
        %v1367 = vld [vmem:[%s4 + $0x10] sm:$0xff]
        %v1368 = vld [vmem:[%s4 + $0x18] sm:$0xff]
        %v1369 = vld [vmem:[%s5] sm:$0x1]
        %v1371 = vlaneseq
        %v1372 = vshrl.u32 %v1371, 7
        %v1373 = vsub.s32 0, %v1372
        %v1374 = vrot.slane %v1369, %v1373
        %v1377 = vsel %vm614, %v1364, 0
        %1379 = vmatprep.subr.mxu0 0.0
        %1380 = vmatpush1.msra.mxu0 %v1365
        %1381 = vmatprep.subr.mxu0 0.0
        %1382 = vmatpush1.msra.mxu0 %v1366
        %1383 = vmatprep.subr.mxu0 0.0
        %1384 = vmatpush1.msra.mxu0 %v1367
        %1385 = vmatprep.subr.mxu0 0.0
        %1386 = vmatpush1.msra.mxu0 %v1368
        %1387 = vmatprep.subr.mxu0 0.0
        %1388 = vmatpush1.msra.mxu0 0.0
        %1389 = vmatprep.subr.mxu0 0.0
        %1390 = vmatpush1.msra.mxu0 0.0
        %1391 = vmatprep.subr.mxu0 0.0
        %1392 = vmatpush1.msra.mxu0 0.0
        %1393 = vmatprep.subr.mxu0 0.0
        %1394 = vmatpush1.msra.mxu0 0.0
        %1395 = vmatprep.subr.mxu0 0.0
        %1396 = vmatpush1.msra.mxu0 0.0
        %1397 = vmatprep.subr.mxu0 0.0
        %1398 = vmatpush1.msra.mxu0 0.0
        %1399 = vmatprep.subr.mxu0 0.0
        %1400 = vmatpush1.msra.mxu0 0.0
        %1401 = vmatprep.subr.mxu0 0.0
        %1402 = vmatpush1.msra.mxu0 0.0
        %1403 = vmatprep.subr.mxu0 0.0
        %1404 = vmatpush1.msra.mxu0 0.0
        %1405 = vmatprep.subr.mxu0 0.0
        %1406 = vmatpush1.msra.mxu0 0.0
        %1407 = vmatprep.subr.mxu0 0.0
        %1408 = vmatpush1.msra.mxu0 0.0
        %1409 = vmatprep.subr.mxu0 0.0
        %1410 = vmatpush1.msra.mxu0 0.0
        %1411 = vmatprep.subr.mxu0 0.0
        %1412 = vmatpush1.msra.mxu0 0.0
        %1413 = vmatprep.subr.mxu0 0.0
        %1414 = vmatpush1.msra.mxu0 0.0
        %1415 = vmatprep.subr.mxu0 0.0
        %1416 = vmatpush1.msra.mxu0 0.0
        %1417 = vmatprep.subr.mxu0 0.0
        %1418 = vmatpush1.msra.mxu0 0.0
        %1419 = vmatprep.subr.mxu0 0.0
        %1420 = vmatpush1.msra.mxu0 0.0
        %1421 = vmatprep.subr.mxu0 0.0
        %1422 = vmatpush1.msra.mxu0 0.0
        %1423 = vmatprep.subr.mxu0 0.0
        %1424 = vmatpush1.msra.mxu0 0.0
        %1425 = vmatprep.subr.mxu0 0.0
        %1426 = vmatpush1.msra.mxu0 0.0
        %1427 = vmatprep.subr.mxu0 0.0
        %1428 = vmatpush1.msra.mxu0 0.0
        %1429 = vmatprep.subr.mxu0 0.0
        %1430 = vmatpush1.msra.mxu0 0.0
        %1431 = vmatprep.subr.mxu0 0.0
        %1432 = vmatpush1.msra.mxu0 0.0
        %1433 = vmatprep.subr.mxu0 0.0
        %1434 = vmatpush1.msra.mxu0 0.0
        %1435 = vmatprep.subr.mxu0 0.0
        %1436 = vmatpush1.msra.mxu0 0.0
        %1437 = vmatprep.subr.mxu0 0.0
        %1438 = vmatpush1.msra.mxu0 0.0
        %1439 = vmatprep.subr.mxu0 0.0
        %1440 = vmatpush1.msra.mxu0 0.0
        %1441 = vmatprep.subr.mxu0 0.0
        %1442 = vmatpush1.msra.mxu0 0.0
        %1443 = vmatprep.mubr.f32.mxu0 0.0
        %1444 = vmatmul.mubr.f32.gmra.mrb[0].mxu0 %v1377
        %v1445 = vpop.f32.mrb[0].mxu0
        %v1446 = vadd.f32 %v1374, %v1445
        %v1447 = vpop.f32.mrb[0].mxu0
        %1448 = vdwg.mxu0
        %v1450 = vsel %vm691, %v602, 0
        %1452 = vmatprep.subr.mxu0 0.0
        %1453 = vmatpush1.msra.mxu0 %v601
        %1454 = vmatprep.subr.mxu0 0.0
        %1455 = vmatpush1.msra.mxu0 0.0
        %1456 = vmatprep.subr.mxu0 0.0
        %1457 = vmatpush1.msra.mxu0 0.0
        %1458 = vmatprep.subr.mxu0 0.0
        %1459 = vmatpush1.msra.mxu0 0.0
        %1460 = vmatprep.subr.mxu0 0.0
        %1461 = vmatpush1.msra.mxu0 0.0
        %1462 = vmatprep.subr.mxu0 0.0
        %1463 = vmatpush1.msra.mxu0 0.0
        %1464 = vmatprep.subr.mxu0 0.0
        %1465 = vmatpush1.msra.mxu0 0.0
        %1466 = vmatprep.subr.mxu0 0.0
        %1467 = vmatpush1.msra.mxu0 0.0
        %1468 = vmatprep.subr.mxu0 0.0
        %1469 = vmatpush1.msra.mxu0 0.0
        %1470 = vmatprep.subr.mxu0 0.0
        %1471 = vmatpush1.msra.mxu0 0.0
        %1472 = vmatprep.subr.mxu0 0.0
        %1473 = vmatpush1.msra.mxu0 0.0
        %1474 = vmatprep.subr.mxu0 0.0
        %1475 = vmatpush1.msra.mxu0 0.0
        %1476 = vmatprep.subr.mxu0 0.0
        %1477 = vmatpush1.msra.mxu0 0.0
        %1478 = vmatprep.subr.mxu0 0.0
        %1479 = vmatpush1.msra.mxu0 0.0
        %1480 = vmatprep.subr.mxu0 0.0
        %1481 = vmatpush1.msra.mxu0 0.0
        %1482 = vmatprep.subr.mxu0 0.0
        %1483 = vmatpush1.msra.mxu0 0.0
        %1484 = vmatprep.subr.mxu0 0.0
        %1485 = vmatpush1.msra.mxu0 0.0
        %1486 = vmatprep.subr.mxu0 0.0
        %1487 = vmatpush1.msra.mxu0 0.0
        %1488 = vmatprep.subr.mxu0 0.0
        %1489 = vmatpush1.msra.mxu0 0.0
        %1490 = vmatprep.subr.mxu0 0.0
        %1491 = vmatpush1.msra.mxu0 0.0
        %1492 = vmatprep.subr.mxu0 0.0
        %1493 = vmatpush1.msra.mxu0 0.0
        %1494 = vmatprep.subr.mxu0 0.0
        %1495 = vmatpush1.msra.mxu0 0.0
        %1496 = vmatprep.subr.mxu0 0.0
        %1497 = vmatpush1.msra.mxu0 0.0
        %1498 = vmatprep.subr.mxu0 0.0
        %1499 = vmatpush1.msra.mxu0 0.0
        %1500 = vmatprep.subr.mxu0 0.0
        %1501 = vmatpush1.msra.mxu0 0.0
        %1502 = vmatprep.subr.mxu0 0.0
        %1503 = vmatpush1.msra.mxu0 0.0
        %1504 = vmatprep.subr.mxu0 0.0
        %1505 = vmatpush1.msra.mxu0 0.0
        %1506 = vmatprep.subr.mxu0 0.0
        %1507 = vmatpush1.msra.mxu0 0.0
        %1508 = vmatprep.subr.mxu0 0.0
        %1509 = vmatpush1.msra.mxu0 0.0
        %1510 = vmatprep.subr.mxu0 0.0
        %1511 = vmatpush1.msra.mxu0 0.0
        %1512 = vmatprep.subr.mxu0 0.0
        %1513 = vmatpush1.msra.mxu0 0.0
        %1514 = vmatprep.subr.mxu0 0.0
        %1515 = vmatpush1.msra.mxu0 0.0
        %1516 = vmatprep.mubr.f32.mxu0 0.0
        %1517 = vmatmul.mubr.f32.gmra.mrb[0].mxu0 %v1450
        %v1518 = vpop.f32.mrb[0].mxu0
        %v1519 = vadd.f32 0.0, %v1518
        %v1520 = vpop.f32.mrb[0].mxu0
        %1521 = vdwg.mxu0
        %v1522 = vld [vmem:[%s6] sm:$0xff]
        %v1523 = vld [vmem:[%s6 + $0x8] sm:$0xff]
        %v1524 = vld [vmem:[%s6 + $0x10] sm:$0xff]
        %v1525 = vld [vmem:[%s6 + $0x18] sm:$0xff]
        %v1526 = vld [vmem:[%s7] sm:$0xff]
        %v1527 = vld [vmem:[%s7 + $0x8] sm:$0xff]
        %v1528 = vld [vmem:[%s7 + $0x10] sm:$0xff]
        %v1529 = vld [vmem:[%s7 + $0x18] sm:$0xff]
        %v1531 = vsel %vm614, %v1519, 0
        %1533 = vmatprep.subr.mxu0 0.0
        %1534 = vmatpush1.msra.mxu0 %v1526
        %1535 = vmatprep.subr.mxu0 0.0
        %1536 = vmatpush1.msra.mxu0 %v1527
        %1537 = vmatprep.subr.mxu0 0.0
        %1538 = vmatpush1.msra.mxu0 %v1528
        %1539 = vmatprep.subr.mxu0 0.0
        %1540 = vmatpush1.msra.mxu0 %v1529
        %1541 = vmatprep.subr.mxu0 0.0
        %1542 = vmatpush1.msra.mxu0 0.0
        %1543 = vmatprep.subr.mxu0 0.0
        %1544 = vmatpush1.msra.mxu0 0.0
        %1545 = vmatprep.subr.mxu0 0.0
        %1546 = vmatpush1.msra.mxu0 0.0
        %1547 = vmatprep.subr.mxu0 0.0
        %1548 = vmatpush1.msra.mxu0 0.0
        %1549 = vmatprep.subr.mxu0 0.0
        %1550 = vmatpush1.msra.mxu0 0.0
        %1551 = vmatprep.subr.mxu0 0.0
        %1552 = vmatpush1.msra.mxu0 0.0
        %1553 = vmatprep.subr.mxu0 0.0
        %1554 = vmatpush1.msra.mxu0 0.0
        %1555 = vmatprep.subr.mxu0 0.0
        %1556 = vmatpush1.msra.mxu0 0.0
        %1557 = vmatprep.subr.mxu0 0.0
        %1558 = vmatpush1.msra.mxu0 0.0
        %1559 = vmatprep.subr.mxu0 0.0
        %1560 = vmatpush1.msra.mxu0 0.0
        %1561 = vmatprep.subr.mxu0 0.0
        %1562 = vmatpush1.msra.mxu0 0.0
        %1563 = vmatprep.subr.mxu0 0.0
        %1564 = vmatpush1.msra.mxu0 0.0
        %1565 = vmatprep.subr.mxu0 0.0
        %1566 = vmatpush1.msra.mxu0 0.0
        %1567 = vmatprep.subr.mxu0 0.0
        %1568 = vmatpush1.msra.mxu0 0.0
        %1569 = vmatprep.subr.mxu0 0.0
        %1570 = vmatpush1.msra.mxu0 0.0
        %1571 = vmatprep.subr.mxu0 0.0
        %1572 = vmatpush1.msra.mxu0 0.0
        %1573 = vmatprep.subr.mxu0 0.0
        %1574 = vmatpush1.msra.mxu0 0.0
        %1575 = vmatprep.subr.mxu0 0.0
        %1576 = vmatpush1.msra.mxu0 0.0
        %1577 = vmatprep.subr.mxu0 0.0
        %1578 = vmatpush1.msra.mxu0 0.0
        %1579 = vmatprep.subr.mxu0 0.0
        %1580 = vmatpush1.msra.mxu0 0.0
        %1581 = vmatprep.subr.mxu0 0.0
        %1582 = vmatpush1.msra.mxu0 0.0
        %1583 = vmatprep.subr.mxu0 0.0
        %1584 = vmatpush1.msra.mxu0 0.0
        %1585 = vmatprep.subr.mxu0 0.0
        %1586 = vmatpush1.msra.mxu0 0.0
        %1587 = vmatprep.subr.mxu0 0.0
        %1588 = vmatpush1.msra.mxu0 0.0
        %1589 = vmatprep.subr.mxu0 0.0
        %1590 = vmatpush1.msra.mxu0 0.0
        %1591 = vmatprep.subr.mxu0 0.0
        %1592 = vmatpush1.msra.mxu0 0.0
        %1593 = vmatprep.subr.mxu0 0.0
        %1594 = vmatpush1.msra.mxu0 0.0
        %1595 = vmatprep.subr.mxu0 0.0
        %1596 = vmatpush1.msra.mxu0 0.0
        %1597 = vmatprep.mubr.f32.mxu0 0.0
        %1598 = vmatmul.mubr.f32.gmra.mrb[0].mxu0 %v1531
        %v1599 = vpop.f32.mrb[0].mxu0
        %v1600 = vadd.f32 0.0, %v1599
        %v1601 = vpop.f32.mrb[0].mxu0
        %1602 = vdwg.mxu0
        %v1604 = vsel %vm614, %v1446, 0
        %1606 = vmatprep.subr.mxu0 0.0
        %1607 = vmatpush1.msra.mxu0 %v1522
        %1608 = vmatprep.subr.mxu0 0.0
        %1609 = vmatpush1.msra.mxu0 %v1523
        %1610 = vmatprep.subr.mxu0 0.0
        %1611 = vmatpush1.msra.mxu0 %v1524
        %1612 = vmatprep.subr.mxu0 0.0
        %1613 = vmatpush1.msra.mxu0 %v1525
        %1614 = vmatprep.subr.mxu0 0.0
        %1615 = vmatpush1.msra.mxu0 0.0
        %1616 = vmatprep.subr.mxu0 0.0
        %1617 = vmatpush1.msra.mxu0 0.0
        %1618 = vmatprep.subr.mxu0 0.0
        %1619 = vmatpush1.msra.mxu0 0.0
        %1620 = vmatprep.subr.mxu0 0.0
        %1621 = vmatpush1.msra.mxu0 0.0
        %1622 = vmatprep.subr.mxu0 0.0
        %1623 = vmatpush1.msra.mxu0 0.0
        %1624 = vmatprep.subr.mxu0 0.0
        %1625 = vmatpush1.msra.mxu0 0.0
        %1626 = vmatprep.subr.mxu0 0.0
        %1627 = vmatpush1.msra.mxu0 0.0
        %1628 = vmatprep.subr.mxu0 0.0
        %1629 = vmatpush1.msra.mxu0 0.0
        %1630 = vmatprep.subr.mxu0 0.0
        %1631 = vmatpush1.msra.mxu0 0.0
        %1632 = vmatprep.subr.mxu0 0.0
        %1633 = vmatpush1.msra.mxu0 0.0
        %1634 = vmatprep.subr.mxu0 0.0
        %1635 = vmatpush1.msra.mxu0 0.0
        %1636 = vmatprep.subr.mxu0 0.0
        %1637 = vmatpush1.msra.mxu0 0.0
        %1638 = vmatprep.subr.mxu0 0.0
        %1639 = vmatpush1.msra.mxu0 0.0
        %1640 = vmatprep.subr.mxu0 0.0
        %1641 = vmatpush1.msra.mxu0 0.0
        %1642 = vmatprep.subr.mxu0 0.0
        %1643 = vmatpush1.msra.mxu0 0.0
        %1644 = vmatprep.subr.mxu0 0.0
        %1645 = vmatpush1.msra.mxu0 0.0
        %1646 = vmatprep.subr.mxu0 0.0
        %1647 = vmatpush1.msra.mxu0 0.0
        %1648 = vmatprep.subr.mxu0 0.0
        %1649 = vmatpush1.msra.mxu0 0.0
        %1650 = vmatprep.subr.mxu0 0.0
        %1651 = vmatpush1.msra.mxu0 0.0
        %1652 = vmatprep.subr.mxu0 0.0
        %1653 = vmatpush1.msra.mxu0 0.0
        %1654 = vmatprep.subr.mxu0 0.0
        %1655 = vmatpush1.msra.mxu0 0.0
        %1656 = vmatprep.subr.mxu0 0.0
        %1657 = vmatpush1.msra.mxu0 0.0
        %1658 = vmatprep.subr.mxu0 0.0
        %1659 = vmatpush1.msra.mxu0 0.0
        %1660 = vmatprep.subr.mxu0 0.0
        %1661 = vmatpush1.msra.mxu0 0.0
        %1662 = vmatprep.subr.mxu0 0.0
        %1663 = vmatpush1.msra.mxu0 0.0
        %1664 = vmatprep.subr.mxu0 0.0
        %1665 = vmatpush1.msra.mxu0 0.0
        %1666 = vmatprep.subr.mxu0 0.0
        %1667 = vmatpush1.msra.mxu0 0.0
        %1668 = vmatprep.subr.mxu0 0.0
        %1669 = vmatpush1.msra.mxu0 0.0
        %1670 = vmatprep.mubr.f32.mxu0 0.0
        %1671 = vmatmul.mubr.f32.gmra.mrb[0].mxu0 %v1604
        %v1672 = vpop.f32.mrb[0].mxu0
        %v1673 = vadd.f32 %v1600, %v1672
        %v1674 = vpop.f32.mrb[0].mxu0
        %1675 = vdwg.mxu0
        %v1676 = vld [vmem:[%s8] sm:$0x1]
        %v1678 = vlaneseq
        %v1679 = vshrl.u32 %v1678, 7
        %v1680 = vsub.s32 0, %v1679
        %v1681 = vrot.slane %v1676, %v1680
        %v1683 = vadd.f32 %v1673, %v1681
        %v1684 = vxor.u32 %v1683, 2147483648
        %v1685 = vmul.f32 %v1684, 1.442695
        %v1686 = vpow.pop %v1685
        %v1687 = vadd.f32 %v1686, 1.0
        %v1688 = vrcp.pop %v1687
        %v1689 = vmul.f32 1.0, %v1688
        %v1690 = vmul.f32 %v1689, %v1446
        %v1691 = vsub.f32 1.0, %v1689
        %v1692 = vmul.f32 %v1691, %v1519
        %v1693 = vadd.f32 %v1690, %v1692
        %v1694 = vadd.f32 %v601, %v1693
        %v1695 = vld [vmem:[%s9] sm:$0x1]
        %v1696 = vld [vmem:[%s10] sm:$0x1]
        %v1697 = vsel %vm614, %v1694, 0.0
        %1698 = vadd.xlane.f32.xlu0 %v1697
        %v1699 = vpop.xlane.xlu0 %1698
        %v1700 = vrcp.pop 32.0
        %v1701 = vmul.f32 %v1699, %v1700
        %v1702 = vsub.f32 %v1694, %v1701
        %v1703 = vmul.f32 %v1702, %v1702
        %v1704 = vsel %vm614, %v1703, 0.0
        %1705 = vadd.xlane.f32.xlu0 %v1704
        %v1706 = vpop.xlane.xlu0 %1705
        %v1707 = vmul.f32 %v1706, %v1700
        %v1708 = vadd.f32 %v1707, 1e-05
        %v1709 = vrsqrt.pop %v1708
        %v1710 = vmul.f32 %v1702, %v1709
        %v1712 = vlaneseq
        %v1713 = vshrl.u32 %v1712, 7
        %v1714 = vsub.s32 0, %v1713
        %v1715 = vrot.slane %v1695, %v1714
        %v1717 = vmul.f32 %v1710, %v1715
        %v1719 = vlaneseq
        %v1720 = vshrl.u32 %v1719, 7
        %v1721 = vsub.s32 0, %v1720
        %v1722 = vrot.slane %v1696, %v1721
        %v1724 = vadd.f32 %v1717, %v1722
        %v1725 = vld [vmem:[%s13] sm:$0xff]
        %v1726 = vld [vmem:[%s13 + $0x8] sm:$0xff]
        %v1727 = vld [vmem:[%s13 + $0x10] sm:$0xff]
        %v1728 = vld [vmem:[%s13 + $0x18] sm:$0xff]
        %v1729 = vld [vmem:[%s14] sm:$0x1]
        %v1731 = vlaneseq
        %v1732 = vshrl.u32 %v1731, 7
        %v1733 = vsub.s32 0, %v1732
        %v1734 = vrot.slane %v1729, %v1733
        %v1737 = vsel %vm614, %v1724, 0
        %1739 = vmatprep.subr.mxu0 0.0
        %1740 = vmatpush1.msra.mxu0 %v1725
        %1741 = vmatprep.subr.mxu0 0.0
        %1742 = vmatpush1.msra.mxu0 %v1726
        %1743 = vmatprep.subr.mxu0 0.0
        %1744 = vmatpush1.msra.mxu0 %v1727
        %1745 = vmatprep.subr.mxu0 0.0
        %1746 = vmatpush1.msra.mxu0 %v1728
        %1747 = vmatprep.subr.mxu0 0.0
        %1748 = vmatpush1.msra.mxu0 0.0
        %1749 = vmatprep.subr.mxu0 0.0
        %1750 = vmatpush1.msra.mxu0 0.0
        %1751 = vmatprep.subr.mxu0 0.0
        %1752 = vmatpush1.msra.mxu0 0.0
        %1753 = vmatprep.subr.mxu0 0.0
        %1754 = vmatpush1.msra.mxu0 0.0
        %1755 = vmatprep.subr.mxu0 0.0
        %1756 = vmatpush1.msra.mxu0 0.0
        %1757 = vmatprep.subr.mxu0 0.0
        %1758 = vmatpush1.msra.mxu0 0.0
        %1759 = vmatprep.subr.mxu0 0.0
        %1760 = vmatpush1.msra.mxu0 0.0
        %1761 = vmatprep.subr.mxu0 0.0
        %1762 = vmatpush1.msra.mxu0 0.0
        %1763 = vmatprep.subr.mxu0 0.0
        %1764 = vmatpush1.msra.mxu0 0.0
        %1765 = vmatprep.subr.mxu0 0.0
        %1766 = vmatpush1.msra.mxu0 0.0
        %1767 = vmatprep.subr.mxu0 0.0
        %1768 = vmatpush1.msra.mxu0 0.0
        %1769 = vmatprep.subr.mxu0 0.0
        %1770 = vmatpush1.msra.mxu0 0.0
        %1771 = vmatprep.subr.mxu0 0.0
        %1772 = vmatpush1.msra.mxu0 0.0
        %1773 = vmatprep.subr.mxu0 0.0
        %1774 = vmatpush1.msra.mxu0 0.0
        %1775 = vmatprep.subr.mxu0 0.0
        %1776 = vmatpush1.msra.mxu0 0.0
        %1777 = vmatprep.subr.mxu0 0.0
        %1778 = vmatpush1.msra.mxu0 0.0
        %1779 = vmatprep.subr.mxu0 0.0
        %1780 = vmatpush1.msra.mxu0 0.0
        %1781 = vmatprep.subr.mxu0 0.0
        %1782 = vmatpush1.msra.mxu0 0.0
        %1783 = vmatprep.subr.mxu0 0.0
        %1784 = vmatpush1.msra.mxu0 0.0
        %1785 = vmatprep.subr.mxu0 0.0
        %1786 = vmatpush1.msra.mxu0 0.0
        %1787 = vmatprep.subr.mxu0 0.0
        %1788 = vmatpush1.msra.mxu0 0.0
        %1789 = vmatprep.subr.mxu0 0.0
        %1790 = vmatpush1.msra.mxu0 0.0
        %1791 = vmatprep.subr.mxu0 0.0
        %1792 = vmatpush1.msra.mxu0 0.0
        %1793 = vmatprep.subr.mxu0 0.0
        %1794 = vmatpush1.msra.mxu0 0.0
        %1795 = vmatprep.subr.mxu0 0.0
        %1796 = vmatpush1.msra.mxu0 0.0
        %1797 = vmatprep.subr.mxu0 0.0
        %1798 = vmatpush1.msra.mxu0 0.0
        %1799 = vmatprep.subr.mxu0 0.0
        %1800 = vmatpush1.msra.mxu0 0.0
        %1801 = vmatprep.subr.mxu0 0.0
        %1802 = vmatpush1.msra.mxu0 0.0
        %1803 = vmatprep.mubr.f32.mxu0 0.0
        %1804 = vmatmul.mubr.f32.gmra.mrb[0].mxu0 %v1737
        %v1805 = vpop.f32.mrb[0].mxu0
        %v1806 = vadd.f32 %v1734, %v1805
        %v1807 = vpop.f32.mrb[0].mxu0
        %1808 = vdwg.mxu0
        %v1809 = vmul.f32 %v1806, 0.5
        %v1810 = vmul.f32 %v1806, 0.70710677
        %v1811 = verf.f32.pop %v1810
        %v1812 = vadd.f32 %v1811, 1.0
        %v1813 = vmul.f32 %v1809, %v1812
        %v1814 = vld [vmem:[%s15] sm:$0xff]
        %v1815 = vld [vmem:[%s15 + $0x8] sm:$0xff]
        %v1816 = vld [vmem:[%s15 + $0x10] sm:$0xff]
        %v1817 = vld [vmem:[%s15 + $0x18] sm:$0xff]
        %v1818 = vld [vmem:[%s15 + $0x20] sm:$0xff]
        %v1819 = vld [vmem:[%s15 + $0x28] sm:$0xff]
        %v1820 = vld [vmem:[%s15 + $0x30] sm:$0xff]
        %v1821 = vld [vmem:[%s15 + $0x38] sm:$0xff]
        %v1822 = vld [vmem:[%s15 + $0x40] sm:$0xff]
        %v1823 = vld [vmem:[%s15 + $0x48] sm:$0xff]
        %v1824 = vld [vmem:[%s15 + $0x50] sm:$0xff]
        %v1825 = vld [vmem:[%s15 + $0x58] sm:$0xff]
        %v1826 = vld [vmem:[%s15 + $0x60] sm:$0xff]
        %v1827 = vld [vmem:[%s15 + $0x68] sm:$0xff]
        %v1828 = vld [vmem:[%s15 + $0x70] sm:$0xff]
        %v1829 = vld [vmem:[%s15 + $0x78] sm:$0xff]
        %v1830 = vld [vmem:[%s16] sm:$0x1]
        %v1832 = vlaneseq
        %v1833 = vshrl.u32 %v1832, 7
        %v1834 = vsub.s32 0, %v1833
        %v1835 = vrot.slane %v1830, %v1834
        %1837 = vmatprep.subr.mxu0 0.0
        %1838 = vmatpush1.msra.mxu0 %v1814
        %1839 = vmatprep.subr.mxu0 0.0
        %1840 = vmatpush1.msra.mxu0 %v1815
        %1841 = vmatprep.subr.mxu0 0.0
        %1842 = vmatpush1.msra.mxu0 %v1816
        %1843 = vmatprep.subr.mxu0 0.0
        %1844 = vmatpush1.msra.mxu0 %v1817
        %1845 = vmatprep.subr.mxu0 0.0
        %1846 = vmatpush1.msra.mxu0 %v1818
        %1847 = vmatprep.subr.mxu0 0.0
        %1848 = vmatpush1.msra.mxu0 %v1819
        %1849 = vmatprep.subr.mxu0 0.0
        %1850 = vmatpush1.msra.mxu0 %v1820
        %1851 = vmatprep.subr.mxu0 0.0
        %1852 = vmatpush1.msra.mxu0 %v1821
        %1853 = vmatprep.subr.mxu0 0.0
        %1854 = vmatpush1.msra.mxu0 %v1822
        %1855 = vmatprep.subr.mxu0 0.0
        %1856 = vmatpush1.msra.mxu0 %v1823
        %1857 = vmatprep.subr.mxu0 0.0
        %1858 = vmatpush1.msra.mxu0 %v1824
        %1859 = vmatprep.subr.mxu0 0.0
        %1860 = vmatpush1.msra.mxu0 %v1825
        %1861 = vmatprep.subr.mxu0 0.0
        %1862 = vmatpush1.msra.mxu0 %v1826
        %1863 = vmatprep.subr.mxu0 0.0
        %1864 = vmatpush1.msra.mxu0 %v1827
        %1865 = vmatprep.subr.mxu0 0.0
        %1866 = vmatpush1.msra.mxu0 %v1828
        %1867 = vmatprep.subr.mxu0 0.0
        %1868 = vmatpush1.msra.mxu0 %v1829
        %1869 = vmatprep.subr.mxu0 0.0
        %1870 = vmatpush1.msra.mxu0 0.0
        %1871 = vmatprep.subr.mxu0 0.0
        %1872 = vmatpush1.msra.mxu0 0.0
        %1873 = vmatprep.subr.mxu0 0.0
        %1874 = vmatpush1.msra.mxu0 0.0
        %1875 = vmatprep.subr.mxu0 0.0
        %1876 = vmatpush1.msra.mxu0 0.0
        %1877 = vmatprep.subr.mxu0 0.0
        %1878 = vmatpush1.msra.mxu0 0.0
        %1879 = vmatprep.subr.mxu0 0.0
        %1880 = vmatpush1.msra.mxu0 0.0
        %1881 = vmatprep.subr.mxu0 0.0
        %1882 = vmatpush1.msra.mxu0 0.0
        %1883 = vmatprep.subr.mxu0 0.0
        %1884 = vmatpush1.msra.mxu0 0.0
        %1885 = vmatprep.subr.mxu0 0.0
        %1886 = vmatpush1.msra.mxu0 0.0
        %1887 = vmatprep.subr.mxu0 0.0
        %1888 = vmatpush1.msra.mxu0 0.0
        %1889 = vmatprep.subr.mxu0 0.0
        %1890 = vmatpush1.msra.mxu0 0.0
        %1891 = vmatprep.subr.mxu0 0.0
        %1892 = vmatpush1.msra.mxu0 0.0
        %1893 = vmatprep.subr.mxu0 0.0
        %1894 = vmatpush1.msra.mxu0 0.0
        %1895 = vmatprep.subr.mxu0 0.0
        %1896 = vmatpush1.msra.mxu0 0.0
        %1897 = vmatprep.subr.mxu0 0.0
        %1898 = vmatpush1.msra.mxu0 0.0
        %1899 = vmatprep.subr.mxu0 0.0
        %1900 = vmatpush1.msra.mxu0 0.0
        %1901 = vmatprep.mubr.f32.mxu0 0.0
        %1902 = vmatmul.mubr.f32.gmra.mrb[0].mxu0 %v1813
        %v1903 = vpop.f32.mrb[0].mxu0
        %v1904 = vadd.f32 %v1835, %v1903
        %v1905 = vpop.f32.mrb[0].mxu0
        %1906 = vdwg.mxu0
        %v1907 = vadd.f32 %v1724, %v1904
        %v1908 = vld [vmem:[%s11] sm:$0x1]
        %v1909 = vld [vmem:[%s12] sm:$0x1]
        %v1910 = vsel %vm614, %v1907, 0.0
        %1911 = vadd.xlane.f32.xlu0 %v1910
        %v1912 = vpop.xlane.xlu0 %1911
        %v1913 = vmul.f32 %v1912, %v1700
        %v1914 = vsub.f32 %v1907, %v1913
        %v1915 = vmul.f32 %v1914, %v1914
        %v1916 = vsel %vm614, %v1915, 0.0
        %1917 = vadd.xlane.f32.xlu0 %v1916
        %v1918 = vpop.xlane.xlu0 %1917
        %v1919 = vmul.f32 %v1918, %v1700
        %v1920 = vadd.f32 %v1919, 1e-05
        %v1921 = vrsqrt.pop %v1920
        %v1922 = vmul.f32 %v1914, %v1921
        %v1924 = vlaneseq
        %v1925 = vshrl.u32 %v1924, 7
        %v1926 = vsub.s32 0, %v1925
        %v1927 = vrot.slane %v1908, %v1926
        %v1929 = vmul.f32 %v1922, %v1927
        %v1931 = vlaneseq
        %v1932 = vshrl.u32 %v1931, 7
        %v1933 = vsub.s32 0, %v1932
        %v1934 = vrot.slane %v1909, %v1933
        %v1936 = vadd.f32 %v1929, %v1934
        %1937 = vst.msk [vmem:[%s600] sm:$0xff] %vm614, %v1936
        %s1938 = sand.u32 %s412, 1
        %s1939 = scalar_lea.sflag [#allocation4], %s1938
        %s1940 = sand.u32 %s412, 1
        %s1941 = smul.addr %s1940, 8
        %s1942 = scalar_lea.vmem [#allocation7], %s1941
        // Predicated region
        $region97: #{tpu_custom_call.1} parent=87 // pred_check
          %p1943 = pneg %p422
        $region98: #{tpu_custom_call.1} parent=87 // pred_check_branch
          %1945 = sbr.rel (%p1943) target = $region100
        $region99: #{tpu_custom_call.1} parent=87 // pred_region
          %s1947 = ssub.s32 128, 128
          %1948 = vsyncadd %s1939, %s1947
          %s1949 = smul.addr %s37, 128
          %s1950 = scalar_lea.hbm %s17, %s1949
          %s1952 = sshll.u32 %s1942, 4
          %s1953 = int_to_ptr.vmem [resolvable:$true] %s1952
          %1955 = dma.vmem_to_hbm [thread:$0]  %s1953, 128, %s1950, %s1939
        $region100: #{tpu_custom_call.1} parent=87 // pred_fallthru
          _
      $region88: #{tpu_custom_call.1} parent=5 // pred_fallthru
        _
      %p1956 = scmp.le.s32.totalorder 2, %s32
      // Predicated region
      $region101: #{tpu_custom_call.1} parent=5 // pred_check
        %p1957 = pneg %p1956
      $region102: #{tpu_custom_call.1} parent=5 // pred_check_branch
        %1959 = sbr.rel (%p1957) target = $region104
      $region103: #{tpu_custom_call.1} parent=5 // pred_region
        %s1960 = ssub.s32 %s32, 2
        // Predicated region
        $region105: #{tpu_custom_call.1} parent=103 // pred_check
          %p1961 = pneg %p428
        $region106: #{tpu_custom_call.1} parent=103 // pred_check_branch
          %1963 = sbr.rel (%p1961) target = $region108
        $region107: #{tpu_custom_call.1} parent=103 // pred_region
          %s1964 = sand.u32 %s413, 1
          %s1965 = scalar_lea.sflag [#allocation4], %s1964
          %s1966 = sand.u32 %s413, 1
          %s1967 = smul.addr %s1966, 8
          %s1968 = scalar_lea.vmem [#allocation7], %s1967
          %1969 = dma.done %s1965, 128
        $region108: #{tpu_custom_call.1} parent=103 // pred_fallthru
          _
      $region104: #{tpu_custom_call.1} parent=5 // pred_fallthru
        _
    $region6: #{tpu_custom_call.1} parent=1 // loop_footer
      %s36 = sadd.s32 1, %s32
    $region7: #{tpu_custom_call.1} parent=1 // loop_footer_branch
      %31 = sbr.rel target = $region3
    $region8: #{tpu_custom_call.1} parent=1 // loop_exit
      _
    %1970 = vsyncpa [#allocation3], 1
    %s1971 = scalar_lea.sflag [#allocation3], 1
    %1972 = vsyncpa %s1971, 1
    %1973 = vsyncpa [#allocation6], 1
    %s1974 = scalar_lea.sflag [#allocation6], 1
    %1975 = vsyncpa %s1974, 1
    %1976 = vsyncpa [#allocation4], 1
    %s1977 = scalar_lea.sflag [#allocation4], 1
    %1978 = vsyncpa %s1977, 1

</llo_original>
